<compile_context>
chip_gen: v7x
topology: tpu7x:2x2x1
jax: 0.10.0
libtpu: 0.0.40
codegen_flags: <defaults>
</compile_context>

<pallas_src>
import functools

import jax
import jax.numpy as jnp
from jax.experimental import pallas as pl
from jax.experimental.pallas import tpu as pltpu

DROPOUT_P = 0.5


def _decoder_kernel(emb_ref, hid_ref, enc_ref, eproj_ref, mask_ref,
                    wa_h_ref, v_ref,
                    wih_ref, bih_ref, whh_ref, bhh_ref,
                    wfc_ref, bfc_ref,
                    logits_ref, hnew_ref, weight_ref,
                    fcin_ref):
    """Grid axis 0 tiles the (padded) vocab dimension of the fc layer."""
    j = pl.program_id(0)
    Bp, E = emb_ref.shape
    _, S, D2 = enc_ref.shape
    H = hid_ref.shape[1]

    # ---- attention + GRU step: computed once, stashed for all vocab tiles ----
    @pl.when(j == 0)
    def _():
        emb = emb_ref[...]                                   # (Bp, E)  f32, dropout applied
        hid = hid_ref[...]                                   # (Bp, H)  f32
        enc = enc_ref[...]                                   # (Bp, S, D2) bf16

        # additive (Bahdanau) attention; eproj already holds enc @ W_e + b_attn
        hproj = jnp.dot(hid.astype(jnp.bfloat16), wa_h_ref[...],
                        preferred_element_type=jnp.float32)   # (Bp, H)
        energy = jnp.tanh(eproj_ref[...] + hproj[:, None, :])  # (Bp, S, H) f32
        scores = jnp.dot(energy.reshape(Bp * S, H), v_ref[...],
                         preferred_element_type=jnp.float32).reshape(Bp, S)
        scores = jnp.where(mask_ref[...] > 0, scores, jnp.float32(-1e10))
        m = jnp.max(scores, axis=-1, keepdims=True)
        ex = jnp.exp(scores - m)
        attn_w = ex / jnp.sum(ex, axis=-1, keepdims=True)       # (Bp, S) f32

        # context = bmm(weight.unsqueeze(1), enc_outputs)  -> MXU contraction
        ctx = jnp.einsum('bqs,bsd->bqd',
                         attn_w[:, None, :].astype(jnp.bfloat16), enc,
                         preferred_element_type=jnp.float32)    # (Bp, 1, D2)
        context = ctx.reshape(Bp, D2)                           # f32

        # fused single-step GRU on cat(emb, context); gate order [r; z; n]
        gru_in = jnp.concatenate([emb, context], axis=-1).astype(jnp.bfloat16)
        gi = jnp.dot(gru_in, wih_ref[...],
                     preferred_element_type=jnp.float32) + bih_ref[...]
        gh = jnp.dot(hid.astype(jnp.bfloat16), whh_ref[...],
                     preferred_element_type=jnp.float32) + bhh_ref[...]
        r = jax.nn.sigmoid(gi[:, 0:H] + gh[:, 0:H])
        z = jax.nn.sigmoid(gi[:, H:2 * H] + gh[:, H:2 * H])
        n = jnp.tanh(gi[:, 2 * H:3 * H] + r * gh[:, 2 * H:3 * H])
        h_new = (1.0 - z) * n + z * hid                         # (Bp, H)

        # stash fused fc input cat(context, output, emb) for every vocab tile
        fcin_ref[...] = jnp.concatenate([context, h_new, emb],
                                        axis=-1).astype(jnp.bfloat16)

        hnew_ref[...] = h_new.astype(hnew_ref.dtype)
        weight_ref[...] = attn_w.astype(weight_ref.dtype)

    # ---- per-vocab-tile logits: one fused big-K MXU matmul ----
    logits_ref[...] = (jnp.dot(fcin_ref[...], wfc_ref[...],
                               preferred_element_type=jnp.float32)
                       + bfc_ref[...]).astype(logits_ref.dtype)


def init_params(key, output_dim, emb_dim, enc_hid_dim, dec_hid_dim):
    """Deterministic parameter init mirroring the PyTorch module's shapes."""
    D2 = 2 * enc_hid_dim
    ks = jax.random.split(key, 10)

    def uni(k, shape, fan_in):
        b = 1.0 / (fan_in ** 0.5)
        return jax.random.uniform(k, shape, jnp.float32, -b, b)

    return {
        "embedding": jax.random.normal(ks[0], (output_dim, emb_dim), jnp.float32),
        # attention: Linear(dec_hid + 2*enc_hid -> dec_hid), v: Linear(dec_hid -> 1)
        "W_attn": uni(ks[1], (dec_hid_dim, dec_hid_dim + D2), dec_hid_dim + D2),
        "b_attn": uni(ks[2], (1, dec_hid_dim), dec_hid_dim + D2),
        "v": uni(ks[3], (1, dec_hid_dim), dec_hid_dim),
        # GRU(input = emb + 2*enc_hid, hidden = dec_hid); gate order [r; z; n]
        "W_ih": uni(ks[4], (3 * dec_hid_dim, emb_dim + D2), dec_hid_dim),
        "b_ih": uni(ks[5], (1, 3 * dec_hid_dim), dec_hid_dim),
        "W_hh": uni(ks[6], (3 * dec_hid_dim, dec_hid_dim), dec_hid_dim),
        "b_hh": uni(ks[7], (1, 3 * dec_hid_dim), dec_hid_dim),
        # fc(2*enc_hid + dec_hid + emb -> output_dim), input order [context; output; emb]
        "W_fc": uni(ks[8], (output_dim, D2 + dec_hid_dim + emb_dim),
                    D2 + dec_hid_dim + emb_dim),
        "b_fc": uni(ks[9], (1, output_dim), D2 + dec_hid_dim + emb_dim),
    }


def decoder_forward(params, tokens, hidden, enc_outputs, mask, seed,
                    *, train=True, tile_o=128):
    """
    tokens:      (B,)   int32
    hidden:      (1, B, dec_hid)
    enc_outputs: (S, B, 2*enc_hid)   (PyTorch time-major convention)
    mask:        (B, S)              (1 = valid, 0 = pad)
    returns (output (B, output_dim), hidden (1, B, dec_hid), weight (B, 1, S))
    """
    O, E = params["embedding"].shape
    H = hidden.shape[-1]
    S, B, D2 = enc_outputs.shape
    Kf = D2 + H + E

    # -------- glue (plain JAX): embedding gather, dropout, layout permutes --------
    emb = jnp.take(params["embedding"], tokens, axis=0)                  # (B, E)
    if train and DROPOUT_P > 0.0:
        # TODO(synk): uses JAX's RNG stream, not torch's — not bit-identical in train mode.
        keep = jax.random.bernoulli(jax.random.PRNGKey(seed), 1.0 - DROPOUT_P, (B, E))
        emb = emb * keep.astype(jnp.float32) * (1.0 / (1.0 - DROPOUT_P))

    hid2d = hidden[0]                                                    # (B, H)
    enc_b = jnp.transpose(enc_outputs, (1, 0, 2))                        # (B, S, D2)
    mask_f = mask.astype(jnp.float32)

    # weight splits / transposes (cat order: attention=(hidden,enc), gru=(emb,context),
    # fc=(context,output,emb)); matmul weights cast to bf16
    wa_h = params["W_attn"][:, :H].T.astype(jnp.bfloat16)                # (H, H)
    wa_e = params["W_attn"][:, H:].T                                     # (D2, H) f32
    ba = params["b_attn"]                                                # (1, H)
    v_col = params["v"].reshape(H, 1)                                    # (H, 1)
    wih = params["W_ih"].T.astype(jnp.bfloat16)                          # (E+D2, 3H)
    bih = params["b_ih"]                                                 # (1, 3H)
    whh = params["W_hh"].T.astype(jnp.bfloat16)                          # (H, 3H)
    bhh = params["b_hh"]                                                 # (1, 3H)
    wfc = params["W_fc"].T                                               # (Kf, O)
    bfc = params["b_fc"]                                                 # (1, O)

    # hoisted, sequence-invariant encoder projection (+ attention bias), f32
    eproj = jnp.einsum('bsd,dh->bsh', enc_b, wa_e) + ba[None, :, :]      # (B, S, H)

    # -------- pad batch to a multiple of 8 sublanes, vocab to tile multiple --------
    Bp = ((B + 7) // 8) * 8
    def pad_b(x):
        return jnp.pad(x, ((0, Bp - B),) + ((0, 0),) * (x.ndim - 1))

    emb_p = pad_b(emb)
    hid_p = pad_b(hid2d)
    enc_p = pad_b(enc_b).astype(jnp.bfloat16)
    eproj_p = pad_b(eproj)
    mask_p = pad_b(mask_f)

    n_tiles = pl.cdiv(O, tile_o)
    Op = n_tiles * tile_o
    wfc_p = jnp.pad(wfc, ((0, 0), (0, Op - O))).astype(jnp.bfloat16)     # (Kf, Op)
    bfc_p = jnp.pad(bfc, ((0, 0), (0, Op - O)))                          # (1, Op)

    full2 = lambda shape: pl.BlockSpec(shape, lambda j: (0, 0))
    full3 = lambda shape: pl.BlockSpec(shape, lambda j: (0, 0, 0))

    logits, h_new, weight = pl.pallas_call(
        _decoder_kernel,
        grid=(n_tiles,),
        in_specs=[
            full2((Bp, E)),                                    # emb
            full2((Bp, H)),                                    # hidden
            full3((Bp, S, D2)),                                # enc_outputs (bf16)
            full3((Bp, S, H)),                                 # eproj (f32)
            full2((Bp, S)),                                    # mask
            full2((H, H)),                                     # W_attn (hidden part)
            full2((H, 1)),                                     # v
            full2((E + D2, 3 * H)),                            # W_ih (fused)
            full2((1, 3 * H)),                                 # b_ih
            full2((H, 3 * H)),                                 # W_hh
            full2((1, 3 * H)),                                 # b_hh
            pl.BlockSpec((Kf, tile_o), lambda j: (0, j)),      # W_fc tile
            pl.BlockSpec((1, tile_o), lambda j: (0, j)),       # b_fc tile
        ],
        out_specs=(
            pl.BlockSpec((Bp, tile_o), lambda j: (0, j)),      # logits tile
            full2((Bp, H)),                                    # new hidden (resident)
            full2((Bp, S)),                                    # attention weights (resident)
        ),
        out_shape=(
            jax.ShapeDtypeStruct((Bp, Op), jnp.float32),
            jax.ShapeDtypeStruct((Bp, H), jnp.float32),
            jax.ShapeDtypeStruct((Bp, S), jnp.float32),
        ),
        scratch_shapes=[pltpu.VMEM((Bp, Kf), jnp.bfloat16)],   # fused fc input
        compiler_params=pltpu.CompilerParams(
            dimension_semantics=("arbitrary",)),               # tiles reuse step-0 scratch
    )(emb_p, hid_p, enc_p, eproj_p, mask_p,
      wa_h, v_col, wih, bih, whh, bhh, wfc_p, bfc_p)

    logits = logits[:B, :O]
    h_new = h_new[:B]
    weight = weight[:B]
    return logits, h_new[None, :, :], weight[:, None, :]


if __name__ == "__main__":
    # small, decoder-consistent shapes (vocab chosen > 128 to exercise the O tiling)
    B, S = 4, 8
    output_dim, emb_dim, enc_hid_dim, dec_hid_dim = 200, 32, 16, 32

    root = jax.random.PRNGKey(0)
    kp, kt, kh, ke = jax.random.split(root, 4)

    params = init_params(kp, output_dim, emb_dim, enc_hid_dim, dec_hid_dim)
    tokens = jax.random.randint(kt, (B,), 0, output_dim, dtype=jnp.int32)
    hidden = jax.random.normal(kh, (1, B, dec_hid_dim), jnp.float32)
    enc_outputs = jax.random.normal(ke, (S, B, 2 * enc_hid_dim), jnp.float32)
    src_lens = jnp.array([8, 6, 4, 3], dtype=jnp.int32)
    mask = (jnp.arange(S)[None, :] < src_lens[:, None]).astype(jnp.int32)   # (B, S)

    out, new_hidden, weight = decoder_forward(params, tokens, hidden, enc_outputs,
                                              mask, seed=1234, train=True)
    jax.block_until_ready((out, new_hidden, weight))

    assert out.shape == (B, output_dim)
    assert new_hidden.shape == (1, B, dec_hid_dim)
    assert weight.shape == (B, 1, S)
    w = weight[:, 0, :]
    assert bool(jnp.all(jnp.isfinite(out)))
    assert bool(jnp.all(jnp.isfinite(new_hidden)))
    assert bool(jnp.allclose(jnp.sum(w, axis=-1), 1.0, atol=1e-4))
    assert bool(jnp.all(jnp.where(mask > 0, 0.0, w) < 1e-6))  # padded positions ~0 attention

    print("KERNEL_OK")
</pallas_src>

<mosaic_0001>
module attributes {stable_mosaic.version = 11 : i64} {
  func.func @_decoder_kernel(%arg0: i32, %arg1: memref<8x32xf32, #tpu.memory_space<vmem>>, %arg2: memref<8x32xf32, #tpu.memory_space<vmem>>, %arg3: memref<8x8x32xbf16, #tpu.memory_space<vmem>>, %arg4: memref<8x8x32xf32, #tpu.memory_space<vmem>>, %arg5: memref<8x8xf32, #tpu.memory_space<vmem>>, %arg6: memref<32x32xbf16, #tpu.memory_space<vmem>>, %arg7: memref<32x1xf32, #tpu.memory_space<vmem>>, %arg8: memref<64x96xbf16, #tpu.memory_space<vmem>>, %arg9: memref<1x96xf32, #tpu.memory_space<vmem>>, %arg10: memref<32x96xbf16, #tpu.memory_space<vmem>>, %arg11: memref<1x96xf32, #tpu.memory_space<vmem>>, %arg12: memref<96x128xbf16, #tpu.memory_space<vmem>>, %arg13: memref<1x128xf32, #tpu.memory_space<vmem>>, %arg14: memref<8x128xf32, #tpu.memory_space<vmem>>, %arg15: memref<8x32xf32, #tpu.memory_space<vmem>>, %arg16: memref<8x8xf32, #tpu.memory_space<vmem>>, %arg17: memref<8x96xbf16, #tpu.memory_space<vmem>>) attributes {dimension_semantics = [#tpu.dimension_semantics<arbitrary>], iteration_bounds = array<i64: 2>, scalar_prefetch = 0 : i64, scratch_operands = 1 : i64, tpu.core_type = #tpu.core_type<tc>, window_params = [{pipeline_mode = #tpu.pipeline_mode<synchronous>, transform_indices = @transform_0, window_bounds = array<i64: 8, 32>}, {pipeline_mode = #tpu.pipeline_mode<synchronous>, transform_indices = @transform_1, window_bounds = array<i64: 8, 32>}, {pipeline_mode = #tpu.pipeline_mode<synchronous>, transform_indices = @transform_2, window_bounds = array<i64: 8, 8, 32>}, {pipeline_mode = #tpu.pipeline_mode<synchronous>, transform_indices = @transform_3, window_bounds = array<i64: 8, 8, 32>}, {pipeline_mode = #tpu.pipeline_mode<synchronous>, transform_indices = @transform_4, window_bounds = array<i64: 8, 8>}, {pipeline_mode = #tpu.pipeline_mode<synchronous>, transform_indices = @transform_5, window_bounds = array<i64: 32, 32>}, {pipeline_mode = #tpu.pipeline_mode<synchronous>, transform_indices = @transform_6, window_bounds = array<i64: 32, 1>}, {pipeline_mode = #tpu.pipeline_mode<synchronous>, transform_indices = @transform_7, window_bounds = array<i64: 64, 96>}, {pipeline_mode = #tpu.pipeline_mode<synchronous>, transform_indices = @transform_8, window_bounds = array<i64: 1, 96>}, {pipeline_mode = #tpu.pipeline_mode<synchronous>, transform_indices = @transform_9, window_bounds = array<i64: 32, 96>}, {pipeline_mode = #tpu.pipeline_mode<synchronous>, transform_indices = @transform_10, window_bounds = array<i64: 1, 96>}, {transform_indices = @transform_11, window_bounds = array<i64: 96, 128>}, {transform_indices = @transform_12, window_bounds = array<i64: 1, 128>}, {transform_indices = @transform_13, window_bounds = array<i64: 8, 128>}, {pipeline_mode = #tpu.pipeline_mode<synchronous>, transform_indices = @transform_14, window_bounds = array<i64: 8, 32>}, {pipeline_mode = #tpu.pipeline_mode<synchronous>, transform_indices = @transform_15, window_bounds = array<i64: 8, 8>}]} {
    %c0_i32 = arith.constant 0 : i32
    %0 = arith.cmpi eq, %arg0, %c0_i32 : i32
    %1 = arith.extui %0 : i1 to i32
    %c0_i32_0 = arith.constant 0 : i32
    %2 = arith.cmpi ne, %1, %c0_i32_0 : i32
    scf.if %2 {
      %c0_8 = arith.constant 0 : index
      %c0_9 = arith.constant 0 : index
      %10 = vector.load %arg1[%c0_8, %c0_9] : memref<8x32xf32, #tpu.memory_space<vmem>>, vector<8x32xf32>
      %c0_10 = arith.constant 0 : index
      %c0_11 = arith.constant 0 : index
      %11 = vector.load %arg2[%c0_10, %c0_11] : memref<8x32xf32, #tpu.memory_space<vmem>>, vector<8x32xf32>
      %c0_12 = arith.constant 0 : index
      %c0_13 = arith.constant 0 : index
      %c0_14 = arith.constant 0 : index
      %12 = vector.load %arg3[%c0_12, %c0_13, %c0_14] : memref<8x8x32xbf16, #tpu.memory_space<vmem>>, vector<8x8x32xbf16>
      %13 = arith.truncf %11 : vector<8x32xf32> to vector<8x32xbf16>
      %c0_15 = arith.constant 0 : index
      %c0_16 = arith.constant 0 : index
      %14 = vector.load %arg6[%c0_15, %c0_16] : memref<32x32xbf16, #tpu.memory_space<vmem>>, vector<32x32xbf16>
      %cst_17 = arith.constant dense<0.000000e+00> : vector<8x32xf32>
      %15 = tpu.matmul %13, %14, %cst_17 {dimension_numbers = #tpu.dot_dimension_numbers<[1], [0], [0], [1], [0, 0, 1, 1], [], []>} : vector<8x32xbf16>, vector<32x32xbf16>, vector<8x32xf32> -> vector<8x32xf32>
      %c0_18 = arith.constant 0 : index
      %c0_19 = arith.constant 0 : index
      %c0_20 = arith.constant 0 : index
      %16 = vector.load %arg4[%c0_18, %c0_19, %c0_20] : memref<8x8x32xf32, #tpu.memory_space<vmem>>, vector<8x8x32xf32>
      %17 = vector.shape_cast %15 : vector<8x32xf32> to vector<8x1x32xf32>
      %18 = vector.broadcast %17 : vector<8x1x32xf32> to vector<8x8x32xf32>
      %19 = arith.addf %16, %18 : vector<8x8x32xf32>
      %20 = math.tanh %19 : vector<8x8x32xf32>
      %21 = vector.shape_cast %20 : vector<8x8x32xf32> to vector<64x32xf32>
      %c0_21 = arith.constant 0 : index
      %c0_22 = arith.constant 0 : index
      %22 = vector.load %arg7[%c0_21, %c0_22] : memref<32x1xf32, #tpu.memory_space<vmem>>, vector<32x1xf32>
      %cst_23 = arith.constant dense<0.000000e+00> : vector<64x1xf32>
      %23 = tpu.matmul %21, %22, %cst_23 {dimension_numbers = #tpu.dot_dimension_numbers<[1], [0], [0], [1], [0, 0, 1, 1], [], []>} : vector<64x32xf32>, vector<32x1xf32>, vector<64x1xf32> -> vector<64x1xf32>
      %24 = vector.shape_cast %23 : vector<64x1xf32> to vector<8x8xf32>
      %c0_24 = arith.constant 0 : index
      %c0_25 = arith.constant 0 : index
      %25 = vector.load %arg5[%c0_24, %c0_25] : memref<8x8xf32, #tpu.memory_space<vmem>>, vector<8x8xf32>
      %cst_26 = arith.constant 0.000000e+00 : f32
      %26 = vector.broadcast %cst_26 : f32 to vector<8x8xf32>
      %27 = arith.cmpf ogt, %25, %26 : vector<8x8xf32>
      %cst_27 = arith.constant -1.000000e+10 : f32
      %28 = vector.broadcast %cst_27 : f32 to vector<8x8xf32>
      %29 = arith.select %27, %24, %28 : vector<8x8xi1>, vector<8x8xf32>
      %cst_28 = arith.constant dense<0xFF800000> : vector<8xf32>
      %30 = vector.multi_reduction <maximumf>, %29, %cst_28 [1] : vector<8x8xf32> to vector<8xf32>
      %31 = vector.shape_cast %30 : vector<8xf32> to vector<8x1xf32>
      %32 = vector.broadcast %31 : vector<8x1xf32> to vector<8x8xf32>
      %33 = arith.subf %29, %32 : vector<8x8xf32>
      %34 = math.exp %33 : vector<8x8xf32>
      %cst_29 = arith.constant dense<0.000000e+00> : vector<8xf32>
      %35 = vector.multi_reduction <add>, %34, %cst_29 [1] : vector<8x8xf32> to vector<8xf32>
      %36 = vector.shape_cast %35 : vector<8xf32> to vector<8x1xf32>
      %37 = vector.broadcast %36 : vector<8x1xf32> to vector<8x8xf32>
      %38 = arith.divf %34, %37 : vector<8x8xf32>
      %39 = vector.shape_cast %38 : vector<8x8xf32> to vector<8x1x8xf32>
      %40 = arith.truncf %39 : vector<8x1x8xf32> to vector<8x1x8xbf16>
      "tpu.trace_start"() <{level = 10 : i32, message = "bqs,bsd->bqd"}> : () -> ()
      %cst_30 = arith.constant dense<0.000000e+00> : vector<8x1x32xf32>
      %41 = tpu.matmul %40, %12, %cst_30 {dimension_numbers = #tpu.dot_dimension_numbers<[2], [1], [1], [2], [0, 0, 0, 1, 1, 2], [0], [0]>} : vector<8x1x8xbf16>, vector<8x8x32xbf16>, vector<8x1x32xf32> -> vector<8x1x32xf32>
      "tpu.trace_stop"() : () -> ()
      %42 = vector.shape_cast %41 : vector<8x1x32xf32> to vector<8x32xf32>
      %43 = tpu.concatenate %10, %42 in 1 : vector<8x32xf32>, vector<8x32xf32> -> vector<8x64xf32>
      %44 = arith.truncf %43 : vector<8x64xf32> to vector<8x64xbf16>
      %c0_31 = arith.constant 0 : index
      %c0_32 = arith.constant 0 : index
      %45 = vector.load %arg8[%c0_31, %c0_32] : memref<64x96xbf16, #tpu.memory_space<vmem>>, vector<64x96xbf16>
      %cst_33 = arith.constant dense<0.000000e+00> : vector<8x96xf32>
      %46 = tpu.matmul %44, %45, %cst_33 {dimension_numbers = #tpu.dot_dimension_numbers<[1], [0], [0], [1], [0, 0, 1, 1], [], []>} : vector<8x64xbf16>, vector<64x96xbf16>, vector<8x96xf32> -> vector<8x96xf32>
      %c0_34 = arith.constant 0 : index
      %c0_35 = arith.constant 0 : index
      %47 = vector.load %arg9[%c0_34, %c0_35] : memref<1x96xf32, #tpu.memory_space<vmem>>, vector<1x96xf32>
      %48 = vector.broadcast %47 : vector<1x96xf32> to vector<8x96xf32>
      %49 = arith.addf %46, %48 : vector<8x96xf32>
      %50 = arith.truncf %11 : vector<8x32xf32> to vector<8x32xbf16>
      %c0_36 = arith.constant 0 : index
      %c0_37 = arith.constant 0 : index
      %51 = vector.load %arg10[%c0_36, %c0_37] : memref<32x96xbf16, #tpu.memory_space<vmem>>, vector<32x96xbf16>
      %cst_38 = arith.constant dense<0.000000e+00> : vector<8x96xf32>
      %52 = tpu.matmul %50, %51, %cst_38 {dimension_numbers = #tpu.dot_dimension_numbers<[1], [0], [0], [1], [0, 0, 1, 1], [], []>} : vector<8x32xbf16>, vector<32x96xbf16>, vector<8x96xf32> -> vector<8x96xf32>
      %c0_39 = arith.constant 0 : index
      %c0_40 = arith.constant 0 : index
      %53 = vector.load %arg11[%c0_39, %c0_40] : memref<1x96xf32, #tpu.memory_space<vmem>>, vector<1x96xf32>
      %54 = vector.broadcast %53 : vector<1x96xf32> to vector<8x96xf32>
      %55 = arith.addf %52, %54 : vector<8x96xf32>
      %56 = vector.extract_strided_slice %49 {offsets = [0, 0], sizes = [8, 32], strides = [1, 1]} : vector<8x96xf32> to vector<8x32xf32>
      %57 = vector.extract_strided_slice %55 {offsets = [0, 0], sizes = [8, 32], strides = [1, 1]} : vector<8x96xf32> to vector<8x32xf32>
      %58 = arith.addf %56, %57 : vector<8x32xf32>
      %59 = arith.negf %58 : vector<8x32xf32>
      %60 = math.exp %59 : vector<8x32xf32>
      %cst_41 = arith.constant 1.000000e+00 : f32
      %61 = vector.broadcast %cst_41 : f32 to vector<8x32xf32>
      %62 = arith.addf %61, %60 : vector<8x32xf32>
      %63 = arith.divf %61, %62 : vector<8x32xf32>
      %64 = vector.extract_strided_slice %49 {offsets = [0, 32], sizes = [8, 32], strides = [1, 1]} : vector<8x96xf32> to vector<8x32xf32>
      %65 = vector.extract_strided_slice %55 {offsets = [0, 32], sizes = [8, 32], strides = [1, 1]} : vector<8x96xf32> to vector<8x32xf32>
      %66 = arith.addf %64, %65 : vector<8x32xf32>
      %67 = arith.negf %66 : vector<8x32xf32>
      %68 = math.exp %67 : vector<8x32xf32>
      %cst_42 = arith.constant 1.000000e+00 : f32
      %69 = vector.broadcast %cst_42 : f32 to vector<8x32xf32>
      %70 = arith.addf %69, %68 : vector<8x32xf32>
      %71 = arith.divf %69, %70 : vector<8x32xf32>
      %72 = vector.extract_strided_slice %49 {offsets = [0, 64], sizes = [8, 32], strides = [1, 1]} : vector<8x96xf32> to vector<8x32xf32>
      %73 = vector.extract_strided_slice %55 {offsets = [0, 64], sizes = [8, 32], strides = [1, 1]} : vector<8x96xf32> to vector<8x32xf32>
      %74 = arith.mulf %63, %73 : vector<8x32xf32>
      %75 = arith.addf %72, %74 : vector<8x32xf32>
      %76 = math.tanh %75 : vector<8x32xf32>
      %cst_43 = arith.constant 1.000000e+00 : f32
      %77 = vector.broadcast %cst_43 : f32 to vector<8x32xf32>
      %78 = arith.subf %77, %71 : vector<8x32xf32>
      %79 = arith.mulf %78, %76 : vector<8x32xf32>
      %80 = arith.mulf %71, %11 : vector<8x32xf32>
      %81 = arith.addf %79, %80 : vector<8x32xf32>
      %82 = tpu.concatenate %42, %81, %10 in 1 : vector<8x32xf32>, vector<8x32xf32>, vector<8x32xf32> -> vector<8x96xf32>
      %83 = arith.truncf %82 : vector<8x96xf32> to vector<8x96xbf16>
      %c0_44 = arith.constant 0 : index
      %c0_45 = arith.constant 0 : index
      %84 = vector.load %arg17[%c0_44, %c0_45] : memref<8x96xbf16, #tpu.memory_space<vmem>>, vector<8x96xbf16>
      tpu.vector_store %arg17[%c0_44, %c0_45], %83 {strides = array<i32>} : memref<8x96xbf16, #tpu.memory_space<vmem>>, vector<8x96xbf16>,
      %c0_46 = arith.constant 0 : index
      %c0_47 = arith.constant 0 : index
      %85 = vector.load %arg15[%c0_46, %c0_47] : memref<8x32xf32, #tpu.memory_space<vmem>>, vector<8x32xf32>
      tpu.vector_store %arg15[%c0_46, %c0_47], %81 {strides = array<i32>} : memref<8x32xf32, #tpu.memory_space<vmem>>, vector<8x32xf32>,
      %c0_48 = arith.constant 0 : index
      %c0_49 = arith.constant 0 : index
      %86 = vector.load %arg16[%c0_48, %c0_49] : memref<8x8xf32, #tpu.memory_space<vmem>>, vector<8x8xf32>
      tpu.vector_store %arg16[%c0_48, %c0_49], %38 {strides = array<i32>} : memref<8x8xf32, #tpu.memory_space<vmem>>, vector<8x8xf32>,
    } else {
    }
    %c0 = arith.constant 0 : index
    %c0_1 = arith.constant 0 : index
    %3 = vector.load %arg17[%c0, %c0_1] : memref<8x96xbf16, #tpu.memory_space<vmem>>, vector<8x96xbf16>
    %c0_2 = arith.constant 0 : index
    %c0_3 = arith.constant 0 : index
    %4 = vector.load %arg12[%c0_2, %c0_3] : memref<96x128xbf16, #tpu.memory_space<vmem>>, vector<96x128xbf16>
    %cst = arith.constant dense<0.000000e+00> : vector<8x128xf32>
    %5 = tpu.matmul %3, %4, %cst {dimension_numbers = #tpu.dot_dimension_numbers<[1], [0], [0], [1], [0, 0, 1, 1], [], []>} : vector<8x96xbf16>, vector<96x128xbf16>, vector<8x128xf32> -> vector<8x128xf32>
    %c0_4 = arith.constant 0 : index
    %c0_5 = arith.constant 0 : index
    %6 = vector.load %arg13[%c0_4, %c0_5] : memref<1x128xf32, #tpu.memory_space<vmem>>, vector<1x128xf32>
    %7 = vector.broadcast %6 : vector<1x128xf32> to vector<8x128xf32>
    %8 = arith.addf %5, %7 : vector<8x128xf32>
    %c0_6 = arith.constant 0 : index
    %c0_7 = arith.constant 0 : index
    %9 = vector.load %arg14[%c0_6, %c0_7] : memref<8x128xf32, #tpu.memory_space<vmem>>, vector<8x128xf32>
    tpu.vector_store %arg14[%c0_6, %c0_7], %8 {strides = array<i32>} : memref<8x128xf32, #tpu.memory_space<vmem>>, vector<8x128xf32>,
    return
  }
  func.func @transform_0(%arg0: i32) -> (i32, i32) {
    %c0_i32 = arith.constant 0 : i32
    %c0_i32_0 = arith.constant 0 : i32
    %c0_i32_1 = arith.constant 0 : i32
    return %c0_i32, %c0_i32_0 : i32, i32
  }
  func.func @transform_1(%arg0: i32) -> (i32, i32) {
    %c0_i32 = arith.constant 0 : i32
    %c0_i32_0 = arith.constant 0 : i32
    %c0_i32_1 = arith.constant 0 : i32
    return %c0_i32, %c0_i32_0 : i32, i32
  }
  func.func @transform_2(%arg0: i32) -> (i32, i32, i32) {
    %c0_i32 = arith.constant 0 : i32
    %c0_i32_0 = arith.constant 0 : i32
    %c0_i32_1 = arith.constant 0 : i32
    %c0_i32_2 = arith.constant 0 : i32
    return %c0_i32, %c0_i32_0, %c0_i32_1 : i32, i32, i32
  }
  func.func @transform_3(%arg0: i32) -> (i32, i32, i32) {
    %c0_i32 = arith.constant 0 : i32
    %c0_i32_0 = arith.constant 0 : i32
    %c0_i32_1 = arith.constant 0 : i32
    %c0_i32_2 = arith.constant 0 : i32
    return %c0_i32, %c0_i32_0, %c0_i32_1 : i32, i32, i32
  }
  func.func @transform_4(%arg0: i32) -> (i32, i32) {
    %c0_i32 = arith.constant 0 : i32
    %c0_i32_0 = arith.constant 0 : i32
    %c0_i32_1 = arith.constant 0 : i32
    return %c0_i32, %c0_i32_0 : i32, i32
  }
  func.func @transform_5(%arg0: i32) -> (i32, i32) {
    %c0_i32 = arith.constant 0 : i32
    %c0_i32_0 = arith.constant 0 : i32
    %c0_i32_1 = arith.constant 0 : i32
    return %c0_i32, %c0_i32_0 : i32, i32
  }
  func.func @transform_6(%arg0: i32) -> (i32, i32) {
    %c0_i32 = arith.constant 0 : i32
    %c0_i32_0 = arith.constant 0 : i32
    %c0_i32_1 = arith.constant 0 : i32
    return %c0_i32, %c0_i32_0 : i32, i32
  }
  func.func @transform_7(%arg0: i32) -> (i32, i32) {
    %c0_i32 = arith.constant 0 : i32
    %c0_i32_0 = arith.constant 0 : i32
    %c0_i32_1 = arith.constant 0 : i32
    return %c0_i32, %c0_i32_0 : i32, i32
  }
  func.func @transform_8(%arg0: i32) -> (i32, i32) {
    %c0_i32 = arith.constant 0 : i32
    %c0_i32_0 = arith.constant 0 : i32
    %c0_i32_1 = arith.constant 0 : i32
    return %c0_i32, %c0_i32_0 : i32, i32
  }
  func.func @transform_9(%arg0: i32) -> (i32, i32) {
    %c0_i32 = arith.constant 0 : i32
    %c0_i32_0 = arith.constant 0 : i32
    %c0_i32_1 = arith.constant 0 : i32
    return %c0_i32, %c0_i32_0 : i32, i32
  }
  func.func @transform_10(%arg0: i32) -> (i32, i32) {
    %c0_i32 = arith.constant 0 : i32
    %c0_i32_0 = arith.constant 0 : i32
    %c0_i32_1 = arith.constant 0 : i32
    return %c0_i32, %c0_i32_0 : i32, i32
  }
  func.func @transform_11(%arg0: i32) -> (i32, i32) {
    %c0_i32 = arith.constant 0 : i32
    %c0_i32_0 = arith.constant 0 : i32
    return %c0_i32, %arg0 : i32, i32
  }
  func.func @transform_12(%arg0: i32) -> (i32, i32) {
    %c0_i32 = arith.constant 0 : i32
    %c0_i32_0 = arith.constant 0 : i32
    return %c0_i32, %arg0 : i32, i32
  }
  func.func @transform_13(%arg0: i32) -> (i32, i32) {
    %c0_i32 = arith.constant 0 : i32
    %c0_i32_0 = arith.constant 0 : i32
    return %c0_i32, %arg0 : i32, i32
  }
  func.func @transform_14(%arg0: i32) -> (i32, i32) {
    %c0_i32 = arith.constant 0 : i32
    %c0_i32_0 = arith.constant 0 : i32
    %c0_i32_1 = arith.constant 0 : i32
    return %c0_i32, %c0_i32_0 : i32, i32
  }
  func.func @transform_15(%arg0: i32) -> (i32, i32) {
    %c0_i32 = arith.constant 0 : i32
    %c0_i32_0 = arith.constant 0 : i32
    %c0_i32_1 = arith.constant 0 : i32
    return %c0_i32, %c0_i32_0 : i32, i32
  }
}

</mosaic_0001>

<llo_original>
// kernel: tpu_custom_call.1
$region0: #{tpu_custom_call.1}
  #allocation0 [shape = 'u32[]', space=smem, size = 0x4, offset = 0x4, fixed_abs, tag = 'smem constant byte address 0x4 - core index']
  #allocation1 [shape = 'u32[144,128]{1,0:T(1,128)}', space=vmem, size = 0x12000, scoped, tag = 'internal scratch']
  #allocation2 [shape = 'bf16[8,96]{1,0:T(8,128)(2,1)}', space=vmem, size = 0x800, scoped, tag = 'scratch operand']
  %s0 = inlined_call_operand.hbm [shape: f32[8,32], index: 0, kind: input, shape index: {}]
  %s1 = inlined_call_operand.hbm [shape: f32[8,32], index: 1, kind: input, shape index: {}]
  %s2 = inlined_call_operand.vmem [shape: bf16[8,8,32], index: 2, kind: input, shape index: {}]
  %s3 = inlined_call_operand.hbm [shape: f32[8,8,32], index: 3, kind: input, shape index: {}]
  %s4 = inlined_call_operand.hbm [shape: f32[8,8], index: 4, kind: input, shape index: {}]
  %s5 = inlined_call_operand.vmem [shape: bf16[32,32], index: 5, kind: input, shape index: {}]
  %s6 = inlined_call_operand.vmem [shape: f32[32,1], index: 6, kind: input, shape index: {}]
  %s7 = inlined_call_operand.hbm [shape: bf16[64,96], index: 7, kind: input, shape index: {}]
  %s8 = inlined_call_operand.vmem [shape: f32[1,96], index: 8, kind: input, shape index: {}]
  %s9 = inlined_call_operand.vmem [shape: bf16[32,96], index: 9, kind: input, shape index: {}]
  %s10 = inlined_call_operand.vmem [shape: f32[1,96], index: 10, kind: input, shape index: {}]
  %s11 = inlined_call_operand.hbm [shape: bf16[96,256], index: 11, kind: input, shape index: {}]
  %s12 = inlined_call_operand.vmem [shape: f32[1,256], index: 12, kind: input, shape index: {}]
  %s13 = inlined_call_operand.hbm [shape: f32[8,256], index: 13, kind: output, shape index: {0}]
  %s14 = inlined_call_operand.hbm [shape: f32[8,32], index: 14, kind: output, shape index: {1}]
  %s15 = inlined_call_operand.hbm [shape: f32[8,8], index: 15, kind: output, shape index: {2}]
  %16 = xla_tuple %s13, %s14, %s15
  %s17 = sld [smem:[#allocation0]]
  $region129: #{tpu_custom_call.1} parent=0
    _
  %s19 = ssub.s32 1, %s17
  %s20 = scalar_select 0, %s19, %s17
  $region1: #{tpu_custom_call.1} parent=0
    #allocation3 [shape = 'u8[4096]{0}', space=vmem, size = 0x1000, scoped, tag = 'input window, operand 0, single buffered']
    #allocation4 [shape = 's32[2]{0}', space=sflag, size = 0x8, scoped, tag = 'scoped memory for tpu_custom_call.1']
    #allocation5 [shape = 's32[2]{0}', space=sflag, size = 0x8, scoped, tag = 'scoped memory for tpu_custom_call.1']
    #allocation6 [shape = 'u8[4096]{0}', space=vmem, size = 0x1000, scoped, tag = 'input window, operand 1, single buffered']
    #allocation7 [shape = 's32[1]{0}', space=sflag, size = 0x4, scoped, tag = 'scoped memory for tpu_custom_call.1']
    #allocation8 [shape = 'u8[32768]{0}', space=vmem, size = 0x8000, scoped, tag = 'input window, operand 3, single buffered']
    #allocation9 [shape = 'u8[4096]{0}', space=vmem, size = 0x1000, scoped, tag = 'input window, operand 4, single buffered']
    #allocation10 [shape = 's32[1]{0}', space=sflag, size = 0x4, scoped, tag = 'scoped memory for tpu_custom_call.1']
    #allocation11 [shape = 'u8[16384]{0}', space=vmem, size = 0x4000, scoped, tag = 'input window, operand 7, single buffered']
    #allocation12 [shape = 'u8[49152]{0}', space=vmem, size = 0xc000, scoped, tag = 'input window, operand 11']
    #allocation13 [shape = 's32[2]{0}', space=sflag, size = 0x8, scoped, tag = 'scoped memory for tpu_custom_call.1']
    #allocation14 [shape = 'u8[8192]{0}', space=vmem, size = 0x2000, scoped, tag = 'output window, operand 0']
    #allocation15 [shape = 'u8[4096]{0}', space=vmem, size = 0x1000, scoped, tag = 'output window, operand 1, single buffered']
    #allocation16 [shape = 's32[1]{0}', space=sflag, size = 0x4, scoped, tag = 'scoped memory for tpu_custom_call.1']
    #allocation17 [shape = 'u8[4096]{0}', space=vmem, size = 0x1000, scoped, tag = 'output window, operand 2, single buffered']
    %21 = vsyncpa [#allocation4], 0
    %22 = vsyncpa [#allocation7], 0
    %23 = vsyncpa [#allocation10], 0
    %24 = vsyncpa [#allocation13], 0
    %s25 = scalar_lea.sflag [#allocation13], 1
    %26 = vsyncpa %s25, 0
    %27 = vsyncpa [#allocation5], 0
    %s28 = scalar_lea.sflag [#allocation5], 1
    %29 = vsyncpa %s28, 0
    %30 = vsyncpa [#allocation16], 0
    loop: start=0, step=1, limit=4
    $region2: #{tpu_custom_call.1} parent=1 // loop_pre_header
      _
    $region3: #{tpu_custom_call.1} parent=1 // loop_header
      %s32 = sphi 0, %s36
      %p33 = scmp.ge.s32.totalorder %s32, 4
      %s40 = sphi 0, %s40
      %s42 = sphi 0, %s40
      %s43 = sphi 0, %s42
      %s57 = sphi 0, %s43
      %s61 = sphi 0, %s61
      %s63 = sphi 0, %s61
      %s64 = sphi 0, %s63
      %s78 = sphi 0, %s64
      %s82 = sphi 0, %s82
      %s84 = sphi 0, %s82
      %s85 = sphi 0, %s84
      %s99 = sphi 0, %s85
      %s103 = sphi 0, %s103
      %s105 = sphi 0, %s103
      %s106 = sphi 0, %s105
      %s120 = sphi 0, %s106
      %s124 = sphi 0, %s124
      %s126 = sphi 0, %s124
      %s127 = sphi 0, %s126
      %s141 = sphi 0, %s127
      %s145 = sphi 0, %s145
      %s147 = sphi 0, %s145
      %s148 = sphi 0, %s147
      %s162 = sphi 0, %s148
      %s166 = sphi 0, %s166
      %s168 = sphi 0, %s166
      %s169 = sphi 0, %s168
      %s183 = sphi 0, %s169
      %s187 = sphi 0, %s187
      %s189 = sphi 0, %s187
      %s190 = sphi 0, %s189
      %s204 = sphi 0, %s190
      %s208 = sphi 0, %s208
      %s210 = sphi 0, %s208
      %s211 = sphi 0, %s210
      %s225 = sphi 0, %s211
      %s229 = sphi 0, %s229
      %s231 = sphi 0, %s229
      %s232 = sphi 0, %s231
      %s246 = sphi 0, %s232
      %s250 = sphi 0, %s250
      %s252 = sphi 0, %s250
      %s253 = sphi 0, %s252
      %s267 = sphi 0, %s253
      %s273 = sphi 0, %s275
      %s276 = sphi 0, %s273
      %s277 = sphi 0, %s276
      %s293 = sphi 0, %s277
      %s299 = sphi 0, %s301
      %s302 = sphi 0, %s299
      %s303 = sphi 0, %s302
      %s319 = sphi 0, %s303
      %s325 = sphi 0, %s327
      %s328 = sphi 0, %s325
      %s329 = sphi 0, %s328
      %s345 = sphi 0, %s329
      %s349 = sphi 0, %s349
      %s351 = sphi 0, %s349
      %s352 = sphi 0, %s351
      %s366 = sphi 0, %s352
      %s370 = sphi 0, %s370
      %s372 = sphi 0, %s370
      %s373 = sphi 0, %s372
      %s387 = sphi 0, %s373
    $region4: #{tpu_custom_call.1} parent=1 // loop_header_branch
      %35 = sbr.rel (%p33) target = $region8
    $region5: #{tpu_custom_call.1} parent=1 // loop_body
      %s37 = ssub.s32 %s32, 1
      %s38 = ssub.s32 %s32, 2
      %s39 = sadd.s32 %s32, 1
      %s41 = sadd.s32 %s40, 1
      %p44 = scmp.eq.s32.totalorder %s32, 1
      %p45 = scmp.ne.s32.totalorder %s40, %s42
      %p46 = scmp.eq.s32.totalorder %s32, 0
      %p47 = por %p45, %p46
      %p48 = scmp.ne.s32.totalorder %s40, %s42
      %p49 = scmp.eq.s32.totalorder %s37, 1
      %p50 = por %p48, %p49
      %p51 = scmp.ne.s32.totalorder %s42, %s43
      %p52 = scmp.eq.s32.totalorder %s37, 0
      %p53 = por %p51, %p52
      %p54 = scmp.ne.s32.totalorder %s42, %s43
      %p55 = scmp.eq.s32.totalorder %s38, 1
      %p56 = por %p54, %p55
      %p58 = scmp.ne.s32.totalorder %s43, %s57
      %p59 = scmp.eq.s32.totalorder %s38, 0
      %p60 = por %p58, %p59
      %s62 = sadd.s32 %s61, 1
      %p65 = scmp.eq.s32.totalorder %s32, 1
      %p66 = scmp.ne.s32.totalorder %s61, %s63
      %p67 = scmp.eq.s32.totalorder %s32, 0
      %p68 = por %p66, %p67
      %p69 = scmp.ne.s32.totalorder %s61, %s63
      %p70 = scmp.eq.s32.totalorder %s37, 1
      %p71 = por %p69, %p70
      %p72 = scmp.ne.s32.totalorder %s63, %s64
      %p73 = scmp.eq.s32.totalorder %s37, 0
      %p74 = por %p72, %p73
      %p75 = scmp.ne.s32.totalorder %s63, %s64
      %p76 = scmp.eq.s32.totalorder %s38, 1
      %p77 = por %p75, %p76
      %p79 = scmp.ne.s32.totalorder %s64, %s78
      %p80 = scmp.eq.s32.totalorder %s38, 0
      %p81 = por %p79, %p80
      %s83 = sadd.s32 %s82, 1
      %p86 = scmp.eq.s32.totalorder %s32, 1
      %p87 = scmp.ne.s32.totalorder %s82, %s84
      %p88 = scmp.eq.s32.totalorder %s32, 0
      %p89 = por %p87, %p88
      %p90 = scmp.ne.s32.totalorder %s82, %s84
      %p91 = scmp.eq.s32.totalorder %s37, 1
      %p92 = por %p90, %p91
      %p93 = scmp.ne.s32.totalorder %s84, %s85
      %p94 = scmp.eq.s32.totalorder %s37, 0
      %p95 = por %p93, %p94
      %p96 = scmp.ne.s32.totalorder %s84, %s85
      %p97 = scmp.eq.s32.totalorder %s38, 1
      %p98 = por %p96, %p97
      %p100 = scmp.ne.s32.totalorder %s85, %s99
      %p101 = scmp.eq.s32.totalorder %s38, 0
      %p102 = por %p100, %p101
      %s104 = sadd.s32 %s103, 1
      %p107 = scmp.eq.s32.totalorder %s32, 1
      %p108 = scmp.ne.s32.totalorder %s103, %s105
      %p109 = scmp.eq.s32.totalorder %s32, 0
      %p110 = por %p108, %p109
      %p111 = scmp.ne.s32.totalorder %s103, %s105
      %p112 = scmp.eq.s32.totalorder %s37, 1
      %p113 = por %p111, %p112
      %p114 = scmp.ne.s32.totalorder %s105, %s106
      %p115 = scmp.eq.s32.totalorder %s37, 0
      %p116 = por %p114, %p115
      %p117 = scmp.ne.s32.totalorder %s105, %s106
      %p118 = scmp.eq.s32.totalorder %s38, 1
      %p119 = por %p117, %p118
      %p121 = scmp.ne.s32.totalorder %s106, %s120
      %p122 = scmp.eq.s32.totalorder %s38, 0
      %p123 = por %p121, %p122
      %s125 = sadd.s32 %s124, 1
      %p128 = scmp.eq.s32.totalorder %s32, 1
      %p129 = scmp.ne.s32.totalorder %s124, %s126
      %p130 = scmp.eq.s32.totalorder %s32, 0
      %p131 = por %p129, %p130
      %p132 = scmp.ne.s32.totalorder %s124, %s126
      %p133 = scmp.eq.s32.totalorder %s37, 1
      %p134 = por %p132, %p133
      %p135 = scmp.ne.s32.totalorder %s126, %s127
      %p136 = scmp.eq.s32.totalorder %s37, 0
      %p137 = por %p135, %p136
      %p138 = scmp.ne.s32.totalorder %s126, %s127
      %p139 = scmp.eq.s32.totalorder %s38, 1
      %p140 = por %p138, %p139
      %p142 = scmp.ne.s32.totalorder %s127, %s141
      %p143 = scmp.eq.s32.totalorder %s38, 0
      %p144 = por %p142, %p143
      %s146 = sadd.s32 %s145, 1
      %p149 = scmp.eq.s32.totalorder %s32, 1
      %p150 = scmp.ne.s32.totalorder %s145, %s147
      %p151 = scmp.eq.s32.totalorder %s32, 0
      %p152 = por %p150, %p151
      %p153 = scmp.ne.s32.totalorder %s145, %s147
      %p154 = scmp.eq.s32.totalorder %s37, 1
      %p155 = por %p153, %p154
      %p156 = scmp.ne.s32.totalorder %s147, %s148
      %p157 = scmp.eq.s32.totalorder %s37, 0
      %p158 = por %p156, %p157
      %p159 = scmp.ne.s32.totalorder %s147, %s148
      %p160 = scmp.eq.s32.totalorder %s38, 1
      %p161 = por %p159, %p160
      %p163 = scmp.ne.s32.totalorder %s148, %s162
      %p164 = scmp.eq.s32.totalorder %s38, 0
      %p165 = por %p163, %p164
      %s167 = sadd.s32 %s166, 1
      %p170 = scmp.eq.s32.totalorder %s32, 1
      %p171 = scmp.ne.s32.totalorder %s166, %s168
      %p172 = scmp.eq.s32.totalorder %s32, 0
      %p173 = por %p171, %p172
      %p174 = scmp.ne.s32.totalorder %s166, %s168
      %p175 = scmp.eq.s32.totalorder %s37, 1
      %p176 = por %p174, %p175
      %p177 = scmp.ne.s32.totalorder %s168, %s169
      %p178 = scmp.eq.s32.totalorder %s37, 0
      %p179 = por %p177, %p178
      %p180 = scmp.ne.s32.totalorder %s168, %s169
      %p181 = scmp.eq.s32.totalorder %s38, 1
      %p182 = por %p180, %p181
      %p184 = scmp.ne.s32.totalorder %s169, %s183
      %p185 = scmp.eq.s32.totalorder %s38, 0
      %p186 = por %p184, %p185
      %s188 = sadd.s32 %s187, 1
      %p191 = scmp.eq.s32.totalorder %s32, 1
      %p192 = scmp.ne.s32.totalorder %s187, %s189
      %p193 = scmp.eq.s32.totalorder %s32, 0
      %p194 = por %p192, %p193
      %p195 = scmp.ne.s32.totalorder %s187, %s189
      %p196 = scmp.eq.s32.totalorder %s37, 1
      %p197 = por %p195, %p196
      %p198 = scmp.ne.s32.totalorder %s189, %s190
      %p199 = scmp.eq.s32.totalorder %s37, 0
      %p200 = por %p198, %p199
      %p201 = scmp.ne.s32.totalorder %s189, %s190
      %p202 = scmp.eq.s32.totalorder %s38, 1
      %p203 = por %p201, %p202
      %p205 = scmp.ne.s32.totalorder %s190, %s204
      %p206 = scmp.eq.s32.totalorder %s38, 0
      %p207 = por %p205, %p206
      %s209 = sadd.s32 %s208, 1
      %p212 = scmp.eq.s32.totalorder %s32, 1
      %p213 = scmp.ne.s32.totalorder %s208, %s210
      %p214 = scmp.eq.s32.totalorder %s32, 0
      %p215 = por %p213, %p214
      %p216 = scmp.ne.s32.totalorder %s208, %s210
      %p217 = scmp.eq.s32.totalorder %s37, 1
      %p218 = por %p216, %p217
      %p219 = scmp.ne.s32.totalorder %s210, %s211
      %p220 = scmp.eq.s32.totalorder %s37, 0
      %p221 = por %p219, %p220
      %p222 = scmp.ne.s32.totalorder %s210, %s211
      %p223 = scmp.eq.s32.totalorder %s38, 1
      %p224 = por %p222, %p223
      %p226 = scmp.ne.s32.totalorder %s211, %s225
      %p227 = scmp.eq.s32.totalorder %s38, 0
      %p228 = por %p226, %p227
      %s230 = sadd.s32 %s229, 1
      %p233 = scmp.eq.s32.totalorder %s32, 1
      %p234 = scmp.ne.s32.totalorder %s229, %s231
      %p235 = scmp.eq.s32.totalorder %s32, 0
      %p236 = por %p234, %p235
      %p237 = scmp.ne.s32.totalorder %s229, %s231
      %p238 = scmp.eq.s32.totalorder %s37, 1
      %p239 = por %p237, %p238
      %p240 = scmp.ne.s32.totalorder %s231, %s232
      %p241 = scmp.eq.s32.totalorder %s37, 0
      %p242 = por %p240, %p241
      %p243 = scmp.ne.s32.totalorder %s231, %s232
      %p244 = scmp.eq.s32.totalorder %s38, 1
      %p245 = por %p243, %p244
      %p247 = scmp.ne.s32.totalorder %s232, %s246
      %p248 = scmp.eq.s32.totalorder %s38, 0
      %p249 = por %p247, %p248
      %s251 = sadd.s32 %s250, 1
      %p254 = scmp.eq.s32.totalorder %s32, 1
      %p255 = scmp.ne.s32.totalorder %s250, %s252
      %p256 = scmp.eq.s32.totalorder %s32, 0
      %p257 = por %p255, %p256
      %p258 = scmp.ne.s32.totalorder %s250, %s252
      %p259 = scmp.eq.s32.totalorder %s37, 1
      %p260 = por %p258, %p259
      %p261 = scmp.ne.s32.totalorder %s252, %s253
      %p262 = scmp.eq.s32.totalorder %s37, 0
      %p263 = por %p261, %p262
      %p264 = scmp.ne.s32.totalorder %s252, %s253
      %p265 = scmp.eq.s32.totalorder %s38, 1
      %p266 = por %p264, %p265
      %p268 = scmp.ne.s32.totalorder %s253, %s267
      %p269 = scmp.eq.s32.totalorder %s38, 0
      %p270 = por %p268, %p269
      %s271 = ssub.s32 %s32, %s39
      %p272 = scmp.eq.s32.totalorder %s271, 0
      %s274 = sadd.s32 %s273, 1
      %s275 = scalar_select %p272, %s273, %s274
      %p278 = pneg %p272
      %p279 = scmp.eq.s32.totalorder %s32, 1
      %p280 = por %p278, %p279
      %p281 = scmp.ne.s32.totalorder %s273, %s276
      %p282 = scmp.eq.s32.totalorder %s32, 0
      %p283 = por %p281, %p282
      %p284 = scmp.ne.s32.totalorder %s273, %s276
      %p285 = scmp.eq.s32.totalorder %s37, 1
      %p286 = por %p284, %p285
      %p287 = scmp.ne.s32.totalorder %s276, %s277
      %p288 = scmp.eq.s32.totalorder %s37, 0
      %p289 = por %p287, %p288
      %p290 = scmp.ne.s32.totalorder %s276, %s277
      %p291 = scmp.eq.s32.totalorder %s38, 1
      %p292 = por %p290, %p291
      %p294 = scmp.ne.s32.totalorder %s277, %s293
      %p295 = scmp.eq.s32.totalorder %s38, 0
      %p296 = por %p294, %p295
      %s297 = ssub.s32 %s32, %s39
      %p298 = scmp.eq.s32.totalorder %s297, 0
      %s300 = sadd.s32 %s299, 1
      %s301 = scalar_select %p298, %s299, %s300
      %p304 = pneg %p298
      %p305 = scmp.eq.s32.totalorder %s32, 1
      %p306 = por %p304, %p305
      %p307 = scmp.ne.s32.totalorder %s299, %s302
      %p308 = scmp.eq.s32.totalorder %s32, 0
      %p309 = por %p307, %p308
      %p310 = scmp.ne.s32.totalorder %s299, %s302
      %p311 = scmp.eq.s32.totalorder %s37, 1
      %p312 = por %p310, %p311
      %p313 = scmp.ne.s32.totalorder %s302, %s303
      %p314 = scmp.eq.s32.totalorder %s37, 0
      %p315 = por %p313, %p314
      %p316 = scmp.ne.s32.totalorder %s302, %s303
      %p317 = scmp.eq.s32.totalorder %s38, 1
      %p318 = por %p316, %p317
      %p320 = scmp.ne.s32.totalorder %s303, %s319
      %p321 = scmp.eq.s32.totalorder %s38, 0
      %p322 = por %p320, %p321
      %s323 = ssub.s32 %s32, %s39
      %p324 = scmp.eq.s32.totalorder %s323, 0
      %s326 = sadd.s32 %s325, 1
      %s327 = scalar_select %p324, %s325, %s326
      %p330 = pneg %p324
      %p331 = scmp.eq.s32.totalorder %s32, 1
      %p332 = por %p330, %p331
      %p333 = scmp.ne.s32.totalorder %s325, %s328
      %p334 = scmp.eq.s32.totalorder %s32, 0
      %p335 = por %p333, %p334
      %p336 = scmp.ne.s32.totalorder %s325, %s328
      %p337 = scmp.eq.s32.totalorder %s37, 1
      %p338 = por %p336, %p337
      %p339 = scmp.ne.s32.totalorder %s328, %s329
      %p340 = scmp.eq.s32.totalorder %s37, 0
      %p341 = por %p339, %p340
      %p342 = scmp.ne.s32.totalorder %s328, %s329
      %p343 = scmp.eq.s32.totalorder %s38, 1
      %p344 = por %p342, %p343
      %p346 = scmp.ne.s32.totalorder %s329, %s345
      %p347 = scmp.eq.s32.totalorder %s38, 0
      %p348 = por %p346, %p347
      %s350 = sadd.s32 %s349, 1
      %p353 = scmp.eq.s32.totalorder %s32, 1
      %p354 = scmp.ne.s32.totalorder %s349, %s351
      %p355 = scmp.eq.s32.totalorder %s32, 0
      %p356 = por %p354, %p355
      %p357 = scmp.ne.s32.totalorder %s349, %s351
      %p358 = scmp.eq.s32.totalorder %s37, 1
      %p359 = por %p357, %p358
      %p360 = scmp.ne.s32.totalorder %s351, %s352
      %p361 = scmp.eq.s32.totalorder %s37, 0
      %p362 = por %p360, %p361
      %p363 = scmp.ne.s32.totalorder %s351, %s352
      %p364 = scmp.eq.s32.totalorder %s38, 1
      %p365 = por %p363, %p364
      %p367 = scmp.ne.s32.totalorder %s352, %s366
      %p368 = scmp.eq.s32.totalorder %s38, 0
      %p369 = por %p367, %p368
      %s371 = sadd.s32 %s370, 1
      %p374 = scmp.eq.s32.totalorder %s32, 1
      %p375 = scmp.ne.s32.totalorder %s370, %s372
      %p376 = scmp.eq.s32.totalorder %s32, 0
      %p377 = por %p375, %p376
      %p378 = scmp.ne.s32.totalorder %s370, %s372
      %p379 = scmp.eq.s32.totalorder %s37, 1
      %p380 = por %p378, %p379
      %p381 = scmp.ne.s32.totalorder %s372, %s373
      %p382 = scmp.eq.s32.totalorder %s37, 0
      %p383 = por %p381, %p382
      %p384 = scmp.ne.s32.totalorder %s372, %s373
      %p385 = scmp.eq.s32.totalorder %s38, 1
      %p386 = por %p384, %p385
      %p388 = scmp.ne.s32.totalorder %s373, %s387
      %p389 = scmp.eq.s32.totalorder %s38, 0
      %p390 = por %p388, %p389
      %p391 = scmp.le.s32.totalorder 1, %s32
      %p392 = scmp.lt.s32.totalorder %s32, 3
      %p393 = pnand %p391, %p392
      %p394 = pneg %p393
      // Predicated region
      $region9: #{tpu_custom_call.1} parent=5 // pred_check
        _
      $region10: #{tpu_custom_call.1} parent=5 // pred_check_branch
        %396 = sbr.rel (%p393) target = $region12
      $region11: #{tpu_custom_call.1} parent=5 // pred_region
        %s397 = ssub.s32 %s32, 1
        // Predicated region
        $region13: #{tpu_custom_call.1} parent=11 // pred_check
          %p398 = pneg %p53
        $region14: #{tpu_custom_call.1} parent=11 // pred_check_branch
          %400 = sbr.rel (%p398) target = $region16
        $region15: #{tpu_custom_call.1} parent=11 // pred_region
          %s402 = ssub.s32 128, 128
          %403 = vsyncadd [#allocation4], %s402
          %s405 = sshll.u32 [#allocation3], 4
          %s406 = int_to_ptr.vmem [resolvable:$true] %s405
          %408 = dma.hbm_to_vmem [thread:$0]  %s0, 128, %s406, [#allocation4]
        $region16: #{tpu_custom_call.1} parent=11 // pred_fallthru
          _
        // Predicated region
        $region17: #{tpu_custom_call.1} parent=11 // pred_check
          %p409 = pneg %p74
        $region18: #{tpu_custom_call.1} parent=11 // pred_check_branch
          %411 = sbr.rel (%p409) target = $region20
        $region19: #{tpu_custom_call.1} parent=11 // pred_region
          %s413 = ssub.s32 128, 128
          %414 = vsyncadd [#allocation7], %s413
          %s416 = sshll.u32 [#allocation6], 4
          %s417 = int_to_ptr.vmem [resolvable:$true] %s416
          %419 = dma.hbm_to_vmem [thread:$0]  %s1, 128, %s417, [#allocation7]
        $region20: #{tpu_custom_call.1} parent=11 // pred_fallthru
          _
        // Predicated region
        $region21: #{tpu_custom_call.1} parent=11 // pred_check
          %p420 = pneg %p95
        $region22: #{tpu_custom_call.1} parent=11 // pred_check_branch
          %422 = sbr.rel (%p420) target = $region24
        $region23: #{tpu_custom_call.1} parent=11 // pred_region
          _
        $region24: #{tpu_custom_call.1} parent=11 // pred_fallthru
          _
        // Predicated region
        $region25: #{tpu_custom_call.1} parent=11 // pred_check
          %p423 = pneg %p116
        $region26: #{tpu_custom_call.1} parent=11 // pred_check_branch
          %425 = sbr.rel (%p423) target = $region28
        $region27: #{tpu_custom_call.1} parent=11 // pred_region
          %s427 = ssub.s32 1024, 1024
          %428 = vsyncadd [#allocation7], %s427
          %s429 = sshll.u32 [#allocation8], 4
          %s430 = int_to_ptr.vmem [resolvable:$true] %s429
          %435 = dma.hbm_to_vmem [thread:$0]  %s3, 1024, %s430, [#allocation7], 128, 128, 8
        $region28: #{tpu_custom_call.1} parent=11 // pred_fallthru
          _
        // Predicated region
        $region29: #{tpu_custom_call.1} parent=11 // pred_check
          %p436 = pneg %p137
        $region30: #{tpu_custom_call.1} parent=11 // pred_check_branch
          %438 = sbr.rel (%p436) target = $region32
        $region31: #{tpu_custom_call.1} parent=11 // pred_region
          %s440 = ssub.s32 128, 128
          %441 = vsyncadd [#allocation10], %s440
          %s443 = sshll.u32 [#allocation9], 4
          %s444 = int_to_ptr.vmem [resolvable:$true] %s443
          %446 = dma.hbm_to_vmem [thread:$0]  %s4, 128, %s444, [#allocation10]
        $region32: #{tpu_custom_call.1} parent=11 // pred_fallthru
          _
        // Predicated region
        $region33: #{tpu_custom_call.1} parent=11 // pred_check
          %p447 = pneg %p158
        $region34: #{tpu_custom_call.1} parent=11 // pred_check_branch
          %449 = sbr.rel (%p447) target = $region36
        $region35: #{tpu_custom_call.1} parent=11 // pred_region
          _
        $region36: #{tpu_custom_call.1} parent=11 // pred_fallthru
          _
        // Predicated region
        $region37: #{tpu_custom_call.1} parent=11 // pred_check
          %p450 = pneg %p179
        $region38: #{tpu_custom_call.1} parent=11 // pred_check_branch
          %452 = sbr.rel (%p450) target = $region40
        $region39: #{tpu_custom_call.1} parent=11 // pred_region
          _
        $region40: #{tpu_custom_call.1} parent=11 // pred_fallthru
          _
        // Predicated region
        $region41: #{tpu_custom_call.1} parent=11 // pred_check
          %p453 = pneg %p200
        $region42: #{tpu_custom_call.1} parent=11 // pred_check_branch
          %455 = sbr.rel (%p453) target = $region44
        $region43: #{tpu_custom_call.1} parent=11 // pred_region
          %s457 = ssub.s32 512, 512
          %458 = vsyncadd [#allocation10], %s457
          %s459 = sshll.u32 [#allocation11], 4
          %s460 = int_to_ptr.vmem [resolvable:$true] %s459
          %465 = dma.hbm_to_vmem [thread:$0]  %s7, 512, %s460, [#allocation10], 64, 64, 4
        $region44: #{tpu_custom_call.1} parent=11 // pred_fallthru
          _
        // Predicated region
        $region45: #{tpu_custom_call.1} parent=11 // pred_check
          %p466 = pneg %p221
        $region46: #{tpu_custom_call.1} parent=11 // pred_check_branch
          %468 = sbr.rel (%p466) target = $region48
        $region47: #{tpu_custom_call.1} parent=11 // pred_region
          _
        $region48: #{tpu_custom_call.1} parent=11 // pred_fallthru
          _
        // Predicated region
        $region49: #{tpu_custom_call.1} parent=11 // pred_check
          %p469 = pneg %p242
        $region50: #{tpu_custom_call.1} parent=11 // pred_check_branch
          %471 = sbr.rel (%p469) target = $region52
        $region51: #{tpu_custom_call.1} parent=11 // pred_region
          _
        $region52: #{tpu_custom_call.1} parent=11 // pred_fallthru
          _
        // Predicated region
        $region53: #{tpu_custom_call.1} parent=11 // pred_check
          %p472 = pneg %p263
        $region54: #{tpu_custom_call.1} parent=11 // pred_check_branch
          %474 = sbr.rel (%p472) target = $region56
        $region55: #{tpu_custom_call.1} parent=11 // pred_region
          _
        $region56: #{tpu_custom_call.1} parent=11 // pred_fallthru
          _
      $region12: #{tpu_custom_call.1} parent=5 // pred_fallthru
        _
      %p475 = scmp.lt.s32.totalorder %s32, 2
      // Predicated region
      $region57: #{tpu_custom_call.1} parent=5 // pred_check
        %p476 = pneg %p475
      $region58: #{tpu_custom_call.1} parent=5 // pred_check_branch
        %478 = sbr.rel (%p476) target = $region60
      $region59: #{tpu_custom_call.1} parent=5 // pred_region
        // Predicated region
        $region61: #{tpu_custom_call.1} parent=59 // pred_check
          %p479 = pneg %p283
        $region62: #{tpu_custom_call.1} parent=59 // pred_check_branch
          %481 = sbr.rel (%p479) target = $region64
        $region63: #{tpu_custom_call.1} parent=59 // pred_region
          %s482 = sand.u32 %s273, 1
          %s483 = scalar_lea.sflag [#allocation13], %s482
          %s484 = sand.u32 %s273, 1
          %s485 = smul.addr %s484, 48
          %s486 = scalar_lea.vmem [#allocation12], %s485
          %s488 = ssub.s32 768, 768
          %489 = vsyncadd %s483, %s488
          %s490 = smul.addr %s32, 64
          %s491 = scalar_lea.hbm %s11, %s490
          %s492 = sshll.u32 %s486, 4
          %s493 = int_to_ptr.vmem [resolvable:$true] %s492
          %498 = dma.hbm_to_vmem [thread:$0]  %s491, 768, %s493, %s483, 128, 64, 4
        $region64: #{tpu_custom_call.1} parent=59 // pred_fallthru
          _
        // Predicated region
        $region65: #{tpu_custom_call.1} parent=59 // pred_check
          %p499 = pneg %p309
        $region66: #{tpu_custom_call.1} parent=59 // pred_check_branch
          %501 = sbr.rel (%p499) target = $region68
        $region67: #{tpu_custom_call.1} parent=59 // pred_region
          %p502 = scmp.lt.s32.totalorder %s32, 1
          %s503 = scalar_select %p502, %s32, 1
          %s504 = scalar_lea.vmem %s12, %s503
        $region68: #{tpu_custom_call.1} parent=59 // pred_fallthru
          _
      $region60: #{tpu_custom_call.1} parent=5 // pred_fallthru
        _
      %p505 = scmp.le.s32.totalorder 1, %s32
      %p506 = scmp.lt.s32.totalorder %s32, 3
      %p507 = pnand %p505, %p506
      %p508 = pneg %p507
      // Predicated region
      $region69: #{tpu_custom_call.1} parent=5 // pred_check
        _
      $region70: #{tpu_custom_call.1} parent=5 // pred_check_branch
        %510 = sbr.rel (%p507) target = $region72
      $region71: #{tpu_custom_call.1} parent=5 // pred_region
        %s511 = ssub.s32 %s32, 1
        // Predicated region
        $region73: #{tpu_custom_call.1} parent=71 // pred_check
          %p512 = pneg %p53
        $region74: #{tpu_custom_call.1} parent=71 // pred_check_branch
          %514 = sbr.rel (%p512) target = $region76
        $region75: #{tpu_custom_call.1} parent=71 // pred_region
          %515 = dma.done [#allocation4], 128
        $region76: #{tpu_custom_call.1} parent=71 // pred_fallthru
          _
        // Predicated region
        $region77: #{tpu_custom_call.1} parent=71 // pred_check
          %p516 = pneg %p74
        $region78: #{tpu_custom_call.1} parent=71 // pred_check_branch
          %518 = sbr.rel (%p516) target = $region80
        $region79: #{tpu_custom_call.1} parent=71 // pred_region
          %519 = dma.done [#allocation7], 128
        $region80: #{tpu_custom_call.1} parent=71 // pred_fallthru
          _
        // Predicated region
        $region81: #{tpu_custom_call.1} parent=71 // pred_check
          %p520 = pneg %p116
        $region82: #{tpu_custom_call.1} parent=71 // pred_check_branch
          %522 = sbr.rel (%p520) target = $region84
        $region83: #{tpu_custom_call.1} parent=71 // pred_region
          %523 = dma.done [#allocation7], 1024
        $region84: #{tpu_custom_call.1} parent=71 // pred_fallthru
          _
        // Predicated region
        $region85: #{tpu_custom_call.1} parent=71 // pred_check
          %p524 = pneg %p137
        $region86: #{tpu_custom_call.1} parent=71 // pred_check_branch
          %526 = sbr.rel (%p524) target = $region88
        $region87: #{tpu_custom_call.1} parent=71 // pred_region
          %527 = dma.done [#allocation10], 128
        $region88: #{tpu_custom_call.1} parent=71 // pred_fallthru
          _
        // Predicated region
        $region89: #{tpu_custom_call.1} parent=71 // pred_check
          %p528 = pneg %p200
        $region90: #{tpu_custom_call.1} parent=71 // pred_check_branch
          %530 = sbr.rel (%p528) target = $region92
        $region91: #{tpu_custom_call.1} parent=71 // pred_region
          %531 = dma.done [#allocation10], 512
        $region92: #{tpu_custom_call.1} parent=71 // pred_fallthru
          _
        %s532 = sand.u32 %s276, 1
        %s533 = scalar_lea.sflag [#allocation13], %s532
        %s534 = sand.u32 %s276, 1
        %s535 = smul.addr %s534, 48
        %s536 = scalar_lea.vmem [#allocation12], %s535
        // Predicated region
        $region93: #{tpu_custom_call.1} parent=71 // pred_check
          %p537 = pneg %p289
        $region94: #{tpu_custom_call.1} parent=71 // pred_check_branch
          %539 = sbr.rel (%p537) target = $region96
        $region95: #{tpu_custom_call.1} parent=71 // pred_region
          %540 = dma.done %s533, 768
        $region96: #{tpu_custom_call.1} parent=71 // pred_fallthru
          _
        %p541 = pneg %p53
        %p542 = pneg %p50
        %p543 = pneg %p74
        %p544 = pneg %p71
        %p545 = pneg %p95
        %p546 = pneg %p92
        %p547 = pneg %p116
        %p548 = pneg %p113
        %p549 = pneg %p137
        %p550 = pneg %p134
        %p551 = pneg %p158
        %p552 = pneg %p155
        %p553 = pneg %p179
        %p554 = pneg %p176
        %p555 = pneg %p200
        %p556 = pneg %p197
        %p557 = pneg %p221
        %p558 = pneg %p218
        %p559 = pneg %p242
        %p560 = pneg %p239
        %p561 = pneg %p263
        %p562 = pneg %p260
        %s563 = sand.u32 %s276, 1
        %s564 = scalar_lea.sflag [#allocation13], %s563
        %s565 = sand.u32 %s276, 1
        %s566 = smul.addr %s565, 48
        %s567 = scalar_lea.vmem [#allocation12], %s566
        %p568 = pneg %p289
        %p569 = pneg %p286
        %p570 = scmp.lt.s32.totalorder %s37, 1
        %s571 = scalar_select %p570, %s37, 1
        %s572 = scalar_lea.vmem %s12, %s571
        %p573 = pneg %p315
        %p574 = pneg %p312
        %p575 = pneg %p341
        %p576 = pneg %p338
        %s577 = sand.u32 %s328, 1
        %s578 = scalar_lea.sflag [#allocation5], %s577
        %s579 = sand.u32 %s328, 1
        %s580 = smul.addr %s579, 8
        %s581 = scalar_lea.vmem [#allocation14], %s580
        %p582 = pneg %p362
        %p583 = pneg %p359
        %p584 = pneg %p383
        %p585 = pneg %p380
        %p586 = scmp.lt.s32.totalorder %s37, 1
        %s587 = scalar_select %p586, %s37, 1
        %s588 = scalar_lea.vmem %s12, %s587
        %p590 = scmp.eq.s32.totalorder %s37, 0
        // Predicated region
        $region97: #{tpu_custom_call.1} parent=71 // pred_check
          %p591 = pneg %p590
        $region98: #{tpu_custom_call.1} parent=71 // pred_check_branch
          %593 = sbr.rel (%p591) target = $region100
        $region99: #{tpu_custom_call.1} parent=71 // pred_region
          %v594 = vld [vmem:[#allocation3] sm:$0xff]
          %v595 = vld [vmem:[#allocation6] sm:$0xff]
          %v596 = vld [vmem:[%s2] sm:$0xf]
          %v597 = vld [vmem:[%s2 + $0x4] sm:$0xf]
          %v598 = vld [vmem:[%s2 + $0x8] sm:$0xf]
          %v599 = vld [vmem:[%s2 + $0xc] sm:$0xf]
          %v600 = vld [vmem:[%s2 + $0x10] sm:$0xf]
          %v601 = vld [vmem:[%s2 + $0x14] sm:$0xf]
          %v602 = vld [vmem:[%s2 + $0x18] sm:$0xf]
          %v603 = vld [vmem:[%s2 + $0x1c] sm:$0xf]
          %v604 = vpack.c.bf16 %v595, %v595
          %v605 = vld [vmem:[%s5] sm:$0xf]
          %v606 = vld [vmem:[%s5 + $0x4] sm:$0xf]
          %v607 = vld [vmem:[%s5 + $0x8] sm:$0xf]
          %v608 = vld [vmem:[%s5 + $0xc] sm:$0xf]
          %v613 = vunpack.c.l.b16 %v605
          %v614 = vunpack.c.l.b16 %v606
          %v615 = vunpack.c.l.b16 %v607
          %v616 = vunpack.c.l.b16 %v608
          %v617 = vpack.c.b16 %v614, %v613
          %v618 = vpack.c.b16 %v616, %v615
          %vm621 = vcmask 261120
          %v623 = vsel %vm621, %v604, 0
          %625 = vmatprep.subr.bf16.mxu0 0
          %626 = vmatpush1.bf16.msra.mxu0 %v617
          %627 = vmatprep.subr.bf16.mxu0 0
          %628 = vmatpush1.bf16.msra.mxu0 %v618
          %629 = vmatprep.subr.bf16.mxu0 0
          %630 = vmatpush1.bf16.msra.mxu0 0
          %631 = vmatprep.subr.bf16.mxu0 0
          %632 = vmatpush1.bf16.msra.mxu0 0
          %633 = vmatprep.subr.bf16.mxu0 0
          %634 = vmatpush1.bf16.msra.mxu0 0
          %635 = vmatprep.subr.bf16.mxu0 0
          %636 = vmatpush1.bf16.msra.mxu0 0
          %637 = vmatprep.subr.bf16.mxu0 0
          %638 = vmatpush1.bf16.msra.mxu0 0
          %639 = vmatprep.subr.bf16.mxu0 0
          %640 = vmatpush1.bf16.msra.mxu0 0
          %641 = vmatprep.subr.bf16.mxu0 0
          %642 = vmatpush1.bf16.msra.mxu0 0
          %643 = vmatprep.subr.bf16.mxu0 0
          %644 = vmatpush1.bf16.msra.mxu0 0
          %645 = vmatprep.subr.bf16.mxu0 0
          %646 = vmatpush1.bf16.msra.mxu0 0
          %647 = vmatprep.subr.bf16.mxu0 0
          %648 = vmatpush1.bf16.msra.mxu0 0
          %649 = vmatprep.subr.bf16.mxu0 0
          %650 = vmatpush1.bf16.msra.mxu0 0
          %651 = vmatprep.subr.bf16.mxu0 0
          %652 = vmatpush1.bf16.msra.mxu0 0
          %653 = vmatprep.subr.bf16.mxu0 0
          %654 = vmatpush1.bf16.msra.mxu0 0
          %655 = vmatprep.subr.bf16.mxu0 0
          %656 = vmatpush1.bf16.msra.mxu0 0
          %657 = vmatprep.mubr.bf16.mxu0 0
          %658 = vmatmul.mubr.bf16.gmra.mrb[0].mxu0 %v623
          %v659 = vpop.f32.mrb[0].mxu0
          %v660 = vadd.f32 0.0, %v659
          %v661 = vpop.f32.mrb[0].mxu0
          %v662 = vpop.f32.mrb[0].mxu0
          %v663 = vpop.f32.mrb[0].mxu0
          %664 = vdwg.mxu0
          %v665 = vld [vmem:[#allocation8] sm:$0xff]
          %v666 = vld [vmem:[#allocation8 + $0x8] sm:$0xff]
          %v667 = vld [vmem:[#allocation8 + $0x10] sm:$0xff]
          %v668 = vld [vmem:[#allocation8 + $0x18] sm:$0xff]
          %v669 = vld [vmem:[#allocation8 + $0x20] sm:$0xff]
          %v670 = vld [vmem:[#allocation8 + $0x28] sm:$0xff]
          %v671 = vld [vmem:[#allocation8 + $0x30] sm:$0xff]
          %v672 = vld [vmem:[#allocation8 + $0x38] sm:$0xff]
          %v674 = vcombine.high %v660, %v660
          %v676 = vunpack.c.l.s4 1966171168
          %v677 = vunpack.c.0.s8 %v676
          %v678 = vlaneseq
          %v679 = vshrl.u32 %v678, 7
          %v680 = vsub.s32 %v677, %v679
          %v681 = vrot.slane %v660, %v680
          %v683 = vunpack.c.l.s4 1966171168
          %v684 = vunpack.c.0.s8 %v683
          %v685 = vlaneseq
          %v686 = vshrl.u32 %v685, 7
          %v687 = vsub.s32 %v684, %v686
          %v688 = vrot.slane %v674, %v687
          %v689 = vcombine.high %v681, %v681
          %v690 = vcombine.high %v688, %v688
          %v692 = vunpack.c.l.s4 1966171168
          %v693 = vunpack.c.0.s8 %v692
          %v694 = vlaneseq
          %v695 = vshrl.u32 %v694, 7
          %v696 = vsub.s32 %v693, %v695
          %v697 = vrot.slane %v681, %v696
          %v699 = vunpack.c.l.s4 1966171168
          %v700 = vunpack.c.0.s8 %v699
          %v701 = vlaneseq
          %v702 = vshrl.u32 %v701, 7
          %v703 = vsub.s32 %v700, %v702
          %v704 = vrot.slane %v688, %v703
          %v706 = vunpack.c.l.s4 1966171168
          %v707 = vunpack.c.0.s8 %v706
          %v708 = vlaneseq
          %v709 = vshrl.u32 %v708, 7
          %v710 = vsub.s32 %v707, %v709
          %v711 = vrot.slane %v689, %v710
          %v713 = vunpack.c.l.s4 1966171168
          %v714 = vunpack.c.0.s8 %v713
          %v715 = vlaneseq
          %v716 = vshrl.u32 %v715, 7
          %v717 = vsub.s32 %v714, %v716
          %v718 = vrot.slane %v690, %v717
          %v719 = vcombine.high %v697, %v697
          %v720 = vcombine.high %v704, %v704
          %v721 = vcombine.high %v711, %v711
          %v722 = vcombine.high %v718, %v718
          %v723 = vlaneseq
          %v724 = vshrl.u32 %v723, 7
          %v725 = vsub.s32 0, %v724
          %v726 = vrot.slane %v697, %v725
          %v727 = vlaneseq
          %v728 = vshrl.u32 %v727, 7
          %v729 = vsub.s32 0, %v728
          %v730 = vrot.slane %v711, %v729
          %v731 = vlaneseq
          %v732 = vshrl.u32 %v731, 7
          %v733 = vsub.s32 0, %v732
          %v734 = vrot.slane %v719, %v733
          %v735 = vlaneseq
          %v736 = vshrl.u32 %v735, 7
          %v737 = vsub.s32 0, %v736
          %v738 = vrot.slane %v721, %v737
          %v739 = vlaneseq
          %v740 = vshrl.u32 %v739, 7
          %v741 = vsub.s32 0, %v740
          %v742 = vrot.slane %v704, %v741
          %v743 = vlaneseq
          %v744 = vshrl.u32 %v743, 7
          %v745 = vsub.s32 0, %v744
          %v746 = vrot.slane %v718, %v745
          %v747 = vlaneseq
          %v748 = vshrl.u32 %v747, 7
          %v749 = vsub.s32 0, %v748
          %v750 = vrot.slane %v720, %v749
          %v751 = vlaneseq
          %v752 = vshrl.u32 %v751, 7
          %v753 = vsub.s32 0, %v752
          %v754 = vrot.slane %v722, %v753
          %v763 = vadd.f32 %v665, %v726
          %v764 = vadd.f32 %v666, %v730
          %v765 = vadd.f32 %v667, %v734
          %v766 = vadd.f32 %v668, %v738
          %v767 = vadd.f32 %v669, %v742
          %v768 = vadd.f32 %v670, %v746
          %v769 = vadd.f32 %v671, %v750
          %v770 = vadd.f32 %v672, %v754
          %v771 = vtanh.pop %v763
          %v772 = vtanh.pop %v764
          %v773 = vtanh.pop %v765
          %v774 = vtanh.pop %v766
          %v775 = vtanh.pop %v767
          %v776 = vtanh.pop %v768
          %v777 = vtanh.pop %v769
          %v778 = vtanh.pop %v770
          %v779 = vld [vmem:[%s6] sm:$0xff]
          %v780 = vld [vmem:[%s6 + $0x8] sm:$0xff]
          %v781 = vld [vmem:[%s6 + $0x10] sm:$0xff]
          %v782 = vld [vmem:[%s6 + $0x18] sm:$0xff]
          %v784 = vsel %vm621, %v771, 0
          %v787 = vsel %vm621, %v772, 0
          %v790 = vsel %vm621, %v773, 0
          %v793 = vsel %vm621, %v774, 0
          %v796 = vsel %vm621, %v775, 0
          %v799 = vsel %vm621, %v776, 0
          %v802 = vsel %vm621, %v777, 0
          %v805 = vsel %vm621, %v778, 0
          %807 = vmatprep.subr.mxu0 0.0
          %808 = vmatpush1.msra.mxu0 %v779
          %809 = vmatprep.subr.mxu0 0.0
          %810 = vmatpush1.msra.mxu0 %v780
          %811 = vmatprep.subr.mxu0 0.0
          %812 = vmatpush1.msra.mxu0 %v781
          %813 = vmatprep.subr.mxu0 0.0
          %814 = vmatpush1.msra.mxu0 %v782
          %815 = vmatprep.subr.mxu0 0.0
          %816 = vmatpush1.msra.mxu0 0.0
          %817 = vmatprep.subr.mxu0 0.0
          %818 = vmatpush1.msra.mxu0 0.0
          %819 = vmatprep.subr.mxu0 0.0
          %820 = vmatpush1.msra.mxu0 0.0
          %821 = vmatprep.subr.mxu0 0.0
          %822 = vmatpush1.msra.mxu0 0.0
          %823 = vmatprep.subr.mxu0 0.0
          %824 = vmatpush1.msra.mxu0 0.0
          %825 = vmatprep.subr.mxu0 0.0
          %826 = vmatpush1.msra.mxu0 0.0
          %827 = vmatprep.subr.mxu0 0.0
          %828 = vmatpush1.msra.mxu0 0.0
          %829 = vmatprep.subr.mxu0 0.0
          %830 = vmatpush1.msra.mxu0 0.0
          %831 = vmatprep.subr.mxu0 0.0
          %832 = vmatpush1.msra.mxu0 0.0
          %833 = vmatprep.subr.mxu0 0.0
          %834 = vmatpush1.msra.mxu0 0.0
          %835 = vmatprep.subr.mxu0 0.0
          %836 = vmatpush1.msra.mxu0 0.0
          %837 = vmatprep.subr.mxu0 0.0
          %838 = vmatpush1.msra.mxu0 0.0
          %839 = vmatprep.subr.mxu0 0.0
          %840 = vmatpush1.msra.mxu0 0.0
          %841 = vmatprep.subr.mxu0 0.0
          %842 = vmatpush1.msra.mxu0 0.0
          %843 = vmatprep.subr.mxu0 0.0
          %844 = vmatpush1.msra.mxu0 0.0
          %845 = vmatprep.subr.mxu0 0.0
          %846 = vmatpush1.msra.mxu0 0.0
          %847 = vmatprep.subr.mxu0 0.0
          %848 = vmatpush1.msra.mxu0 0.0
          %849 = vmatprep.subr.mxu0 0.0
          %850 = vmatpush1.msra.mxu0 0.0
          %851 = vmatprep.subr.mxu0 0.0
          %852 = vmatpush1.msra.mxu0 0.0
          %853 = vmatprep.subr.mxu0 0.0
          %854 = vmatpush1.msra.mxu0 0.0
          %855 = vmatprep.subr.mxu0 0.0
          %856 = vmatpush1.msra.mxu0 0.0
          %857 = vmatprep.subr.mxu0 0.0
          %858 = vmatpush1.msra.mxu0 0.0
          %859 = vmatprep.subr.mxu0 0.0
          %860 = vmatpush1.msra.mxu0 0.0
          %861 = vmatprep.subr.mxu0 0.0
          %862 = vmatpush1.msra.mxu0 0.0
          %863 = vmatprep.subr.mxu0 0.0
          %864 = vmatpush1.msra.mxu0 0.0
          %865 = vmatprep.subr.mxu0 0.0
          %866 = vmatpush1.msra.mxu0 0.0
          %867 = vmatprep.subr.mxu0 0.0
          %868 = vmatpush1.msra.mxu0 0.0
          %869 = vmatprep.subr.mxu0 0.0
          %870 = vmatpush1.msra.mxu0 0.0
          %871 = vmatprep.mubr.f32.mxu0 0.0
          %872 = vmatmul.mubr.f32.gmra.mrb[0].mxu0 %v784
          %v873 = vpop.f32.mrb[0].mxu0
          %v874 = vadd.f32 0.0, %v873
          %v875 = vpop.f32.mrb[0].mxu0
          %876 = vmatprep.mubr.f32.mxu0 0.0
          %877 = vmatmul.mubr.f32.gmra.mrb[0].mxu0 %v787
          %v878 = vpop.f32.mrb[0].mxu0
          %v879 = vadd.f32 0.0, %v878
          %v880 = vpop.f32.mrb[0].mxu0
          %881 = vmatprep.mubr.f32.mxu0 0.0
          %882 = vmatmul.mubr.f32.gmra.mrb[0].mxu0 %v790
          %v883 = vpop.f32.mrb[0].mxu0
          %v884 = vadd.f32 0.0, %v883
          %v885 = vpop.f32.mrb[0].mxu0
          %886 = vmatprep.mubr.f32.mxu0 0.0
          %887 = vmatmul.mubr.f32.gmra.mrb[0].mxu0 %v793
          %v888 = vpop.f32.mrb[0].mxu0
          %v889 = vadd.f32 0.0, %v888
          %v890 = vpop.f32.mrb[0].mxu0
          %891 = vmatprep.mubr.f32.mxu0 0.0
          %892 = vmatmul.mubr.f32.gmra.mrb[0].mxu0 %v796
          %v893 = vpop.f32.mrb[0].mxu0
          %v894 = vadd.f32 0.0, %v893
          %v895 = vpop.f32.mrb[0].mxu0
          %896 = vmatprep.mubr.f32.mxu0 0.0
          %897 = vmatmul.mubr.f32.gmra.mrb[0].mxu0 %v799
          %v898 = vpop.f32.mrb[0].mxu0
          %v899 = vadd.f32 0.0, %v898
          %v900 = vpop.f32.mrb[0].mxu0
          %901 = vmatprep.mubr.f32.mxu0 0.0
          %902 = vmatmul.mubr.f32.gmra.mrb[0].mxu0 %v802
          %v903 = vpop.f32.mrb[0].mxu0
          %v904 = vadd.f32 0.0, %v903
          %v905 = vpop.f32.mrb[0].mxu0
          %906 = vmatprep.mubr.f32.mxu0 0.0
          %907 = vmatmul.mubr.f32.gmra.mrb[0].mxu0 %v805
          %v908 = vpop.f32.mrb[0].mxu0
          %v909 = vadd.f32 0.0, %v908
          %v910 = vpop.f32.mrb[0].mxu0
          %911 = vdwg.mxu0
          %v912 = vld [vmem:[#allocation9] sm:$0xff]
          %vm913 = vcmp.gt.f32.partialorder %v912, 0.0
          %922 = vset.pattern.permute.xlu0 0
          %923 = vperm.xlu0 %922, %v874
          %v924 = vpop.permute.xlu0 %923
          %925 = vset.pattern.permute.xlu0 0
          %926 = vperm.xlu0 %925, %v879
          %v927 = vpop.permute.xlu0 %926
          %928 = vset.pattern.permute.xlu0 0
          %929 = vperm.xlu0 %928, %v884
          %v930 = vpop.permute.xlu0 %929
          %931 = vset.pattern.permute.xlu0 0
          %932 = vperm.xlu0 %931, %v889
          %v933 = vpop.permute.xlu0 %932
          %934 = vset.pattern.permute.xlu0 0
          %935 = vperm.xlu0 %934, %v894
          %v936 = vpop.permute.xlu0 %935
          %937 = vset.pattern.permute.xlu0 0
          %938 = vperm.xlu0 %937, %v899
          %v939 = vpop.permute.xlu0 %938
          %940 = vset.pattern.permute.xlu0 0
          %941 = vperm.xlu0 %940, %v904
          %v942 = vpop.permute.xlu0 %941
          %943 = vset.pattern.permute.xlu0 0
          %944 = vperm.xlu0 %943, %v909
          %v945 = vpop.permute.xlu0 %944
          %v946 = vlaneseq
          %v947 = vand.u32 %v946, 127
          %v948 = vlaneseq
          %v949 = vshrl.u32 %v948, 7
          %v950 = vsub.s32 %v947, %v949
          %v951 = vrot.slane %v924, %v950
          %v952 = vlaneseq
          %v953 = vshrl.u32 %v952, 7
          %v954 = vsub.s32 %v947, %v953
          %v955 = vrot.slane %v927, %v954
          %v956 = vlaneseq
          %v957 = vshrl.u32 %v956, 7
          %v958 = vsub.s32 %v947, %v957
          %v959 = vrot.slane %v930, %v958
          %v960 = vlaneseq
          %v961 = vshrl.u32 %v960, 7
          %v962 = vsub.s32 %v947, %v961
          %v963 = vrot.slane %v933, %v962
          %v964 = vlaneseq
          %v965 = vshrl.u32 %v964, 7
          %v966 = vsub.s32 %v947, %v965
          %v967 = vrot.slane %v936, %v966
          %v968 = vlaneseq
          %v969 = vshrl.u32 %v968, 7
          %v970 = vsub.s32 %v947, %v969
          %v971 = vrot.slane %v939, %v970
          %v972 = vlaneseq
          %v973 = vshrl.u32 %v972, 7
          %v974 = vsub.s32 %v947, %v973
          %v975 = vrot.slane %v942, %v974
          %v976 = vlaneseq
          %v977 = vshrl.u32 %v976, 7
          %v978 = vsub.s32 %v947, %v977
          %v979 = vrot.slane %v945, %v978
          %vm980 = vcmask 1041409
          %v981 = vsel %vm980, %v955, %v951
          %vm982 = vcmask 1042434
          %v983 = vsel %vm982, %v959, %v981
          %vm984 = vcmask 1043459
          %v985 = vsel %vm984, %v963, %v983
          %vm986 = vcmask 1044484
          %v987 = vsel %vm986, %v967, %v985
          %vm988 = vcmask 1045509
          %v989 = vsel %vm988, %v971, %v987
          %vm990 = vcmask 1046534
          %v991 = vsel %vm990, %v975, %v989
          %vm992 = vcmask 1047559
          %v993 = vsel %vm992, %v979, %v991
          %v995 = vsel %vm913, %v993, -1e+10
          %vm996 = vcmask 64512
          %v997 = vsel %vm996, %v995, -inf
          %998 = vmax.xlane.f32.xlu0 %v997
          %v999 = vpop.xlane.xlu0 %998
          %v1000 = vsub.f32 %v995, %v999
          %v1001 = vmul.f32 %v1000, 1.442695
          %v1002 = vpow.pop %v1001
          %v1003 = vsel %vm996, %v1002, 0.0
          %1004 = vadd.xlane.f32.xlu0 %v1003
          %v1005 = vpop.xlane.xlu0 %1004
          %v1006 = vrcp.pop %v1005
          %v1007 = vmul.f32 %v1002, %v1006
          %v1009 = vcombine.high %v1007, %v1007
          %v1011 = vunpack.c.l.s4 1966171168
          %v1012 = vunpack.c.0.s8 %v1011
          %v1013 = vlaneseq
          %v1014 = vshrl.u32 %v1013, 7
          %v1015 = vsub.s32 %v1012, %v1014
          %v1016 = vrot.slane %v1007, %v1015
          %v1018 = vunpack.c.l.s4 1966171168
          %v1019 = vunpack.c.0.s8 %v1018
          %v1020 = vlaneseq
          %v1021 = vshrl.u32 %v1020, 7
          %v1022 = vsub.s32 %v1019, %v1021
          %v1023 = vrot.slane %v1009, %v1022
          %v1024 = vcombine.high %v1016, %v1016
          %v1025 = vcombine.high %v1023, %v1023
          %v1027 = vunpack.c.l.s4 1966171168
          %v1028 = vunpack.c.0.s8 %v1027
          %v1029 = vlaneseq
          %v1030 = vshrl.u32 %v1029, 7
          %v1031 = vsub.s32 %v1028, %v1030
          %v1032 = vrot.slane %v1016, %v1031
          %v1034 = vunpack.c.l.s4 1966171168
          %v1035 = vunpack.c.0.s8 %v1034
          %v1036 = vlaneseq
          %v1037 = vshrl.u32 %v1036, 7
          %v1038 = vsub.s32 %v1035, %v1037
          %v1039 = vrot.slane %v1023, %v1038
          %v1041 = vunpack.c.l.s4 1966171168
          %v1042 = vunpack.c.0.s8 %v1041
          %v1043 = vlaneseq
          %v1044 = vshrl.u32 %v1043, 7
          %v1045 = vsub.s32 %v1042, %v1044
          %v1046 = vrot.slane %v1024, %v1045
          %v1048 = vunpack.c.l.s4 1966171168
          %v1049 = vunpack.c.0.s8 %v1048
          %v1050 = vlaneseq
          %v1051 = vshrl.u32 %v1050, 7
          %v1052 = vsub.s32 %v1049, %v1051
          %v1053 = vrot.slane %v1025, %v1052
          %v1054 = vcombine.high %v1032, %v1032
          %v1055 = vcombine.high %v1039, %v1039
          %v1056 = vcombine.high %v1046, %v1046
          %v1057 = vcombine.high %v1053, %v1053
          %v1066 = vpack.c.bf16 %v1032, %v1032
          %v1067 = vpack.c.bf16 %v1046, %v1046
          %v1068 = vpack.c.bf16 %v1054, %v1054
          %v1069 = vpack.c.bf16 %v1056, %v1056
          %v1070 = vpack.c.bf16 %v1039, %v1039
          %v1071 = vpack.c.bf16 %v1053, %v1053
          %v1072 = vpack.c.bf16 %v1055, %v1055
          %v1073 = vpack.c.bf16 %v1057, %v1057
          %v1075 = vsel %vm996, %v1066, 0
          %vm1077 = vcmask 1043456
          %v1079 = vsel %vm1077, %v596, 0
          %1081 = vmatprep.subr.bf16.mxu0 0
          %1082 = vmatpush1.bf16.msra.mxu0 %v1079
          %1083 = vmatprep.subr.bf16.mxu0 0
          %1084 = vmatpush1.bf16.msra.mxu0 0
          %1085 = vmatprep.subr.bf16.mxu0 0
          %1086 = vmatpush1.bf16.msra.mxu0 0
          %1087 = vmatprep.subr.bf16.mxu0 0
          %1088 = vmatpush1.bf16.msra.mxu0 0
          %1089 = vmatprep.subr.bf16.mxu0 0
          %1090 = vmatpush1.bf16.msra.mxu0 0
          %1091 = vmatprep.subr.bf16.mxu0 0
          %1092 = vmatpush1.bf16.msra.mxu0 0
          %1093 = vmatprep.subr.bf16.mxu0 0
          %1094 = vmatpush1.bf16.msra.mxu0 0
          %1095 = vmatprep.subr.bf16.mxu0 0
          %1096 = vmatpush1.bf16.msra.mxu0 0
          %1097 = vmatprep.subr.bf16.mxu0 0
          %1098 = vmatpush1.bf16.msra.mxu0 0
          %1099 = vmatprep.subr.bf16.mxu0 0
          %1100 = vmatpush1.bf16.msra.mxu0 0
          %1101 = vmatprep.subr.bf16.mxu0 0
          %1102 = vmatpush1.bf16.msra.mxu0 0
          %1103 = vmatprep.subr.bf16.mxu0 0
          %1104 = vmatpush1.bf16.msra.mxu0 0
          %1105 = vmatprep.subr.bf16.mxu0 0
          %1106 = vmatpush1.bf16.msra.mxu0 0
          %1107 = vmatprep.subr.bf16.mxu0 0
          %1108 = vmatpush1.bf16.msra.mxu0 0
          %1109 = vmatprep.subr.bf16.mxu0 0
          %1110 = vmatpush1.bf16.msra.mxu0 0
          %1111 = vmatprep.subr.bf16.mxu0 0
          %1112 = vmatpush1.bf16.msra.mxu0 0
          %1113 = vmatprep.mubr.bf16.mxu0 0
          %1114 = vmatmul.mubr.bf16.gmra.mrb[0].mxu0 %v1075
          %v1115 = vpop.f32.mrb[0].mxu0
          %v1116 = vadd.f32 0.0, %v1115
          %v1117 = vpop.f32.mrb[0].mxu0
          %v1118 = vpop.f32.mrb[0].mxu0
          %v1119 = vpop.f32.mrb[0].mxu0
          %1120 = vdwg.mxu0
          %v1122 = vsel %vm996, %v1067, 0
          %v1125 = vsel %vm1077, %v597, 0
          %1127 = vmatprep.subr.bf16.mxu0 0
          %1128 = vmatpush1.bf16.msra.mxu0 %v1125
          %1129 = vmatprep.subr.bf16.mxu0 0
          %1130 = vmatpush1.bf16.msra.mxu0 0
          %1131 = vmatprep.subr.bf16.mxu0 0
          %1132 = vmatpush1.bf16.msra.mxu0 0
          %1133 = vmatprep.subr.bf16.mxu0 0
          %1134 = vmatpush1.bf16.msra.mxu0 0
          %1135 = vmatprep.subr.bf16.mxu0 0
          %1136 = vmatpush1.bf16.msra.mxu0 0
          %1137 = vmatprep.subr.bf16.mxu0 0
          %1138 = vmatpush1.bf16.msra.mxu0 0
          %1139 = vmatprep.subr.bf16.mxu0 0
          %1140 = vmatpush1.bf16.msra.mxu0 0
          %1141 = vmatprep.subr.bf16.mxu0 0
          %1142 = vmatpush1.bf16.msra.mxu0 0
          %1143 = vmatprep.subr.bf16.mxu0 0
          %1144 = vmatpush1.bf16.msra.mxu0 0
          %1145 = vmatprep.subr.bf16.mxu0 0
          %1146 = vmatpush1.bf16.msra.mxu0 0
          %1147 = vmatprep.subr.bf16.mxu0 0
          %1148 = vmatpush1.bf16.msra.mxu0 0
          %1149 = vmatprep.subr.bf16.mxu0 0
          %1150 = vmatpush1.bf16.msra.mxu0 0
          %1151 = vmatprep.subr.bf16.mxu0 0
          %1152 = vmatpush1.bf16.msra.mxu0 0
          %1153 = vmatprep.subr.bf16.mxu0 0
          %1154 = vmatpush1.bf16.msra.mxu0 0
          %1155 = vmatprep.subr.bf16.mxu0 0
          %1156 = vmatpush1.bf16.msra.mxu0 0
          %1157 = vmatprep.subr.bf16.mxu0 0
          %1158 = vmatpush1.bf16.msra.mxu0 0
          %1159 = vmatprep.mubr.bf16.mxu0 0
          %1160 = vmatmul.mubr.bf16.gmra.mrb[0].mxu0 %v1122
          %v1161 = vpop.f32.mrb[0].mxu0
          %v1162 = vadd.f32 0.0, %v1161
          %v1163 = vpop.f32.mrb[0].mxu0
          %v1164 = vpop.f32.mrb[0].mxu0
          %v1165 = vpop.f32.mrb[0].mxu0
          %1166 = vdwg.mxu0
          %v1168 = vsel %vm996, %v1068, 0
          %v1171 = vsel %vm1077, %v598, 0
          %1173 = vmatprep.subr.bf16.mxu0 0
          %1174 = vmatpush1.bf16.msra.mxu0 %v1171
          %1175 = vmatprep.subr.bf16.mxu0 0
          %1176 = vmatpush1.bf16.msra.mxu0 0
          %1177 = vmatprep.subr.bf16.mxu0 0
          %1178 = vmatpush1.bf16.msra.mxu0 0
          %1179 = vmatprep.subr.bf16.mxu0 0
          %1180 = vmatpush1.bf16.msra.mxu0 0
          %1181 = vmatprep.subr.bf16.mxu0 0
          %1182 = vmatpush1.bf16.msra.mxu0 0
          %1183 = vmatprep.subr.bf16.mxu0 0
          %1184 = vmatpush1.bf16.msra.mxu0 0
          %1185 = vmatprep.subr.bf16.mxu0 0
          %1186 = vmatpush1.bf16.msra.mxu0 0
          %1187 = vmatprep.subr.bf16.mxu0 0
          %1188 = vmatpush1.bf16.msra.mxu0 0
          %1189 = vmatprep.subr.bf16.mxu0 0
          %1190 = vmatpush1.bf16.msra.mxu0 0
          %1191 = vmatprep.subr.bf16.mxu0 0
          %1192 = vmatpush1.bf16.msra.mxu0 0
          %1193 = vmatprep.subr.bf16.mxu0 0
          %1194 = vmatpush1.bf16.msra.mxu0 0
          %1195 = vmatprep.subr.bf16.mxu0 0
          %1196 = vmatpush1.bf16.msra.mxu0 0
          %1197 = vmatprep.subr.bf16.mxu0 0
          %1198 = vmatpush1.bf16.msra.mxu0 0
          %1199 = vmatprep.subr.bf16.mxu0 0
          %1200 = vmatpush1.bf16.msra.mxu0 0
          %1201 = vmatprep.subr.bf16.mxu0 0
          %1202 = vmatpush1.bf16.msra.mxu0 0
          %1203 = vmatprep.subr.bf16.mxu0 0
          %1204 = vmatpush1.bf16.msra.mxu0 0
          %1205 = vmatprep.mubr.bf16.mxu0 0
          %1206 = vmatmul.mubr.bf16.gmra.mrb[0].mxu0 %v1168
          %v1207 = vpop.f32.mrb[0].mxu0
          %v1208 = vadd.f32 0.0, %v1207
          %v1209 = vpop.f32.mrb[0].mxu0
          %v1210 = vpop.f32.mrb[0].mxu0
          %v1211 = vpop.f32.mrb[0].mxu0
          %1212 = vdwg.mxu0
          %v1214 = vsel %vm996, %v1069, 0
          %v1217 = vsel %vm1077, %v599, 0
          %1219 = vmatprep.subr.bf16.mxu0 0
          %1220 = vmatpush1.bf16.msra.mxu0 %v1217
          %1221 = vmatprep.subr.bf16.mxu0 0
          %1222 = vmatpush1.bf16.msra.mxu0 0
          %1223 = vmatprep.subr.bf16.mxu0 0
          %1224 = vmatpush1.bf16.msra.mxu0 0
          %1225 = vmatprep.subr.bf16.mxu0 0
          %1226 = vmatpush1.bf16.msra.mxu0 0
          %1227 = vmatprep.subr.bf16.mxu0 0
          %1228 = vmatpush1.bf16.msra.mxu0 0
          %1229 = vmatprep.subr.bf16.mxu0 0
          %1230 = vmatpush1.bf16.msra.mxu0 0
          %1231 = vmatprep.subr.bf16.mxu0 0
          %1232 = vmatpush1.bf16.msra.mxu0 0
          %1233 = vmatprep.subr.bf16.mxu0 0
          %1234 = vmatpush1.bf16.msra.mxu0 0
          %1235 = vmatprep.subr.bf16.mxu0 0
          %1236 = vmatpush1.bf16.msra.mxu0 0
          %1237 = vmatprep.subr.bf16.mxu0 0
          %1238 = vmatpush1.bf16.msra.mxu0 0
          %1239 = vmatprep.subr.bf16.mxu0 0
          %1240 = vmatpush1.bf16.msra.mxu0 0
          %1241 = vmatprep.subr.bf16.mxu0 0
          %1242 = vmatpush1.bf16.msra.mxu0 0
          %1243 = vmatprep.subr.bf16.mxu0 0
          %1244 = vmatpush1.bf16.msra.mxu0 0
          %1245 = vmatprep.subr.bf16.mxu0 0
          %1246 = vmatpush1.bf16.msra.mxu0 0
          %1247 = vmatprep.subr.bf16.mxu0 0
          %1248 = vmatpush1.bf16.msra.mxu0 0
          %1249 = vmatprep.subr.bf16.mxu0 0
          %1250 = vmatpush1.bf16.msra.mxu0 0
          %1251 = vmatprep.mubr.bf16.mxu0 0
          %1252 = vmatmul.mubr.bf16.gmra.mrb[0].mxu0 %v1214
          %v1253 = vpop.f32.mrb[0].mxu0
          %v1254 = vadd.f32 0.0, %v1253
          %v1255 = vpop.f32.mrb[0].mxu0
          %v1256 = vpop.f32.mrb[0].mxu0
          %v1257 = vpop.f32.mrb[0].mxu0
          %1258 = vdwg.mxu0
          %v1260 = vsel %vm996, %v1070, 0
          %v1263 = vsel %vm1077, %v600, 0
          %1265 = vmatprep.subr.bf16.mxu0 0
          %1266 = vmatpush1.bf16.msra.mxu0 %v1263
          %1267 = vmatprep.subr.bf16.mxu0 0
          %1268 = vmatpush1.bf16.msra.mxu0 0
          %1269 = vmatprep.subr.bf16.mxu0 0
          %1270 = vmatpush1.bf16.msra.mxu0 0
          %1271 = vmatprep.subr.bf16.mxu0 0
          %1272 = vmatpush1.bf16.msra.mxu0 0
          %1273 = vmatprep.subr.bf16.mxu0 0
          %1274 = vmatpush1.bf16.msra.mxu0 0
          %1275 = vmatprep.subr.bf16.mxu0 0
          %1276 = vmatpush1.bf16.msra.mxu0 0
          %1277 = vmatprep.subr.bf16.mxu0 0
          %1278 = vmatpush1.bf16.msra.mxu0 0
          %1279 = vmatprep.subr.bf16.mxu0 0
          %1280 = vmatpush1.bf16.msra.mxu0 0
          %1281 = vmatprep.subr.bf16.mxu0 0
          %1282 = vmatpush1.bf16.msra.mxu0 0
          %1283 = vmatprep.subr.bf16.mxu0 0
          %1284 = vmatpush1.bf16.msra.mxu0 0
          %1285 = vmatprep.subr.bf16.mxu0 0
          %1286 = vmatpush1.bf16.msra.mxu0 0
          %1287 = vmatprep.subr.bf16.mxu0 0
          %1288 = vmatpush1.bf16.msra.mxu0 0
          %1289 = vmatprep.subr.bf16.mxu0 0
          %1290 = vmatpush1.bf16.msra.mxu0 0
          %1291 = vmatprep.subr.bf16.mxu0 0
          %1292 = vmatpush1.bf16.msra.mxu0 0
          %1293 = vmatprep.subr.bf16.mxu0 0
          %1294 = vmatpush1.bf16.msra.mxu0 0
          %1295 = vmatprep.subr.bf16.mxu0 0
          %1296 = vmatpush1.bf16.msra.mxu0 0
          %1297 = vmatprep.mubr.bf16.mxu0 0
          %1298 = vmatmul.mubr.bf16.gmra.mrb[0].mxu0 %v1260
          %v1299 = vpop.f32.mrb[0].mxu0
          %v1300 = vadd.f32 0.0, %v1299
          %v1301 = vpop.f32.mrb[0].mxu0
          %v1302 = vpop.f32.mrb[0].mxu0
          %v1303 = vpop.f32.mrb[0].mxu0
          %1304 = vdwg.mxu0
          %v1306 = vsel %vm996, %v1071, 0
          %v1309 = vsel %vm1077, %v601, 0
          %1311 = vmatprep.subr.bf16.mxu0 0
          %1312 = vmatpush1.bf16.msra.mxu0 %v1309
          %1313 = vmatprep.subr.bf16.mxu0 0
          %1314 = vmatpush1.bf16.msra.mxu0 0
          %1315 = vmatprep.subr.bf16.mxu0 0
          %1316 = vmatpush1.bf16.msra.mxu0 0
          %1317 = vmatprep.subr.bf16.mxu0 0
          %1318 = vmatpush1.bf16.msra.mxu0 0
          %1319 = vmatprep.subr.bf16.mxu0 0
          %1320 = vmatpush1.bf16.msra.mxu0 0
          %1321 = vmatprep.subr.bf16.mxu0 0
          %1322 = vmatpush1.bf16.msra.mxu0 0
          %1323 = vmatprep.subr.bf16.mxu0 0
          %1324 = vmatpush1.bf16.msra.mxu0 0
          %1325 = vmatprep.subr.bf16.mxu0 0
          %1326 = vmatpush1.bf16.msra.mxu0 0
          %1327 = vmatprep.subr.bf16.mxu0 0
          %1328 = vmatpush1.bf16.msra.mxu0 0
          %1329 = vmatprep.subr.bf16.mxu0 0
          %1330 = vmatpush1.bf16.msra.mxu0 0
          %1331 = vmatprep.subr.bf16.mxu0 0
          %1332 = vmatpush1.bf16.msra.mxu0 0
          %1333 = vmatprep.subr.bf16.mxu0 0
          %1334 = vmatpush1.bf16.msra.mxu0 0
          %1335 = vmatprep.subr.bf16.mxu0 0
          %1336 = vmatpush1.bf16.msra.mxu0 0
          %1337 = vmatprep.subr.bf16.mxu0 0
          %1338 = vmatpush1.bf16.msra.mxu0 0
          %1339 = vmatprep.subr.bf16.mxu0 0
          %1340 = vmatpush1.bf16.msra.mxu0 0
          %1341 = vmatprep.subr.bf16.mxu0 0
          %1342 = vmatpush1.bf16.msra.mxu0 0
          %1343 = vmatprep.mubr.bf16.mxu0 0
          %1344 = vmatmul.mubr.bf16.gmra.mrb[0].mxu0 %v1306
          %v1345 = vpop.f32.mrb[0].mxu0
          %v1346 = vadd.f32 0.0, %v1345
          %v1347 = vpop.f32.mrb[0].mxu0
          %v1348 = vpop.f32.mrb[0].mxu0
          %v1349 = vpop.f32.mrb[0].mxu0
          %1350 = vdwg.mxu0
          %v1352 = vsel %vm996, %v1072, 0
          %v1355 = vsel %vm1077, %v602, 0
          %1357 = vmatprep.subr.bf16.mxu0 0
          %1358 = vmatpush1.bf16.msra.mxu0 %v1355
          %1359 = vmatprep.subr.bf16.mxu0 0
          %1360 = vmatpush1.bf16.msra.mxu0 0
          %1361 = vmatprep.subr.bf16.mxu0 0
          %1362 = vmatpush1.bf16.msra.mxu0 0
          %1363 = vmatprep.subr.bf16.mxu0 0
          %1364 = vmatpush1.bf16.msra.mxu0 0
          %1365 = vmatprep.subr.bf16.mxu0 0
          %1366 = vmatpush1.bf16.msra.mxu0 0
          %1367 = vmatprep.subr.bf16.mxu0 0
          %1368 = vmatpush1.bf16.msra.mxu0 0
          %1369 = vmatprep.subr.bf16.mxu0 0
          %1370 = vmatpush1.bf16.msra.mxu0 0
          %1371 = vmatprep.subr.bf16.mxu0 0
          %1372 = vmatpush1.bf16.msra.mxu0 0
          %1373 = vmatprep.subr.bf16.mxu0 0
          %1374 = vmatpush1.bf16.msra.mxu0 0
          %1375 = vmatprep.subr.bf16.mxu0 0
          %1376 = vmatpush1.bf16.msra.mxu0 0
          %1377 = vmatprep.subr.bf16.mxu0 0
          %1378 = vmatpush1.bf16.msra.mxu0 0
          %1379 = vmatprep.subr.bf16.mxu0 0
          %1380 = vmatpush1.bf16.msra.mxu0 0
          %1381 = vmatprep.subr.bf16.mxu0 0
          %1382 = vmatpush1.bf16.msra.mxu0 0
          %1383 = vmatprep.subr.bf16.mxu0 0
          %1384 = vmatpush1.bf16.msra.mxu0 0
          %1385 = vmatprep.subr.bf16.mxu0 0
          %1386 = vmatpush1.bf16.msra.mxu0 0
          %1387 = vmatprep.subr.bf16.mxu0 0
          %1388 = vmatpush1.bf16.msra.mxu0 0
          %1389 = vmatprep.mubr.bf16.mxu0 0
          %1390 = vmatmul.mubr.bf16.gmra.mrb[0].mxu0 %v1352
          %v1391 = vpop.f32.mrb[0].mxu0
          %v1392 = vadd.f32 0.0, %v1391
          %v1393 = vpop.f32.mrb[0].mxu0
          %v1394 = vpop.f32.mrb[0].mxu0
          %v1395 = vpop.f32.mrb[0].mxu0
          %1396 = vdwg.mxu0
          %v1398 = vsel %vm996, %v1073, 0
          %v1401 = vsel %vm1077, %v603, 0
          %1403 = vmatprep.subr.bf16.mxu0 0
          %1404 = vmatpush1.bf16.msra.mxu0 %v1401
          %1405 = vmatprep.subr.bf16.mxu0 0
          %1406 = vmatpush1.bf16.msra.mxu0 0
          %1407 = vmatprep.subr.bf16.mxu0 0
          %1408 = vmatpush1.bf16.msra.mxu0 0
          %1409 = vmatprep.subr.bf16.mxu0 0
          %1410 = vmatpush1.bf16.msra.mxu0 0
          %1411 = vmatprep.subr.bf16.mxu0 0
          %1412 = vmatpush1.bf16.msra.mxu0 0
          %1413 = vmatprep.subr.bf16.mxu0 0
          %1414 = vmatpush1.bf16.msra.mxu0 0
          %1415 = vmatprep.subr.bf16.mxu0 0
          %1416 = vmatpush1.bf16.msra.mxu0 0
          %1417 = vmatprep.subr.bf16.mxu0 0
          %1418 = vmatpush1.bf16.msra.mxu0 0
          %1419 = vmatprep.subr.bf16.mxu0 0
          %1420 = vmatpush1.bf16.msra.mxu0 0
          %1421 = vmatprep.subr.bf16.mxu0 0
          %1422 = vmatpush1.bf16.msra.mxu0 0
          %1423 = vmatprep.subr.bf16.mxu0 0
          %1424 = vmatpush1.bf16.msra.mxu0 0
          %1425 = vmatprep.subr.bf16.mxu0 0
          %1426 = vmatpush1.bf16.msra.mxu0 0
          %1427 = vmatprep.subr.bf16.mxu0 0
          %1428 = vmatpush1.bf16.msra.mxu0 0
          %1429 = vmatprep.subr.bf16.mxu0 0
          %1430 = vmatpush1.bf16.msra.mxu0 0
          %1431 = vmatprep.subr.bf16.mxu0 0
          %1432 = vmatpush1.bf16.msra.mxu0 0
          %1433 = vmatprep.subr.bf16.mxu0 0
          %1434 = vmatpush1.bf16.msra.mxu0 0
          %1435 = vmatprep.mubr.bf16.mxu0 0
          %1436 = vmatmul.mubr.bf16.gmra.mrb[0].mxu0 %v1398
          %v1437 = vpop.f32.mrb[0].mxu0
          %v1438 = vadd.f32 0.0, %v1437
          %v1439 = vpop.f32.mrb[0].mxu0
          %v1440 = vpop.f32.mrb[0].mxu0
          %v1441 = vpop.f32.mrb[0].mxu0
          %1442 = vdwg.mxu0
          %v1451 = vrot.slane %v1162, 7
          %v1452 = vsel %vm980, %v1451, %v1116
          %v1453 = vrot.slane %v1208, 6
          %v1454 = vsel %vm982, %v1453, %v1452
          %v1455 = vrot.slane %v1254, 5
          %v1456 = vsel %vm984, %v1455, %v1454
          %v1457 = vrot.slane %v1300, 4
          %v1458 = vsel %vm986, %v1457, %v1456
          %v1459 = vrot.slane %v1346, 3
          %v1460 = vsel %vm988, %v1459, %v1458
          %v1461 = vrot.slane %v1392, 2
          %v1462 = vsel %vm990, %v1461, %v1460
          %v1463 = vrot.slane %v1438, 1
          %v1464 = vsel %vm992, %v1463, %v1462
          %1465 = vrot.lane.b32.xlu0 %v1464, 32
          %v1466 = vpop.permute.xlu0 %1465
          %v1468 = vsel %vm621, %v594, %v1466
          %v1469 = vpack.c.bf16 %v1468, %v1468
          %v1470 = vld [vmem:[#allocation11] sm:$0xf]
          %v1471 = vld [vmem:[#allocation11 + $0x4] sm:$0xf]
          %v1472 = vld [vmem:[#allocation11 + $0x8] sm:$0xf]
          %v1473 = vld [vmem:[#allocation11 + $0xc] sm:$0xf]
          %v1474 = vld [vmem:[#allocation11 + $0x10] sm:$0xf]
          %v1475 = vld [vmem:[#allocation11 + $0x14] sm:$0xf]
          %v1476 = vld [vmem:[#allocation11 + $0x18] sm:$0xf]
          %v1477 = vld [vmem:[#allocation11 + $0x1c] sm:$0xf]
          %v1478 = vld [vmem:[%s8] sm:$0x1]
          %v1480 = vlaneseq
          %v1481 = vshrl.u32 %v1480, 7
          %v1482 = vsub.s32 0, %v1481
          %v1483 = vrot.slane %v1478, %v1482
          %v1493 = vunpack.c.l.b16 %v1470
          %v1494 = vunpack.c.l.b16 %v1471
          %v1495 = vunpack.c.l.b16 %v1472
          %v1496 = vunpack.c.l.b16 %v1473
          %v1497 = vunpack.c.l.b16 %v1474
          %v1498 = vunpack.c.l.b16 %v1475
          %v1499 = vunpack.c.l.b16 %v1476
          %v1500 = vunpack.c.l.b16 %v1477
          %v1501 = vpack.c.b16 %v1494, %v1493
          %v1502 = vpack.c.b16 %v1496, %v1495
          %v1503 = vpack.c.b16 %v1498, %v1497
          %v1504 = vpack.c.b16 %v1500, %v1499
          %vm1509 = vcmask 523264
          %v1511 = vsel %vm1509, %v1469, 0
          %1513 = vmatprep.subr.bf16.mxu0 0
          %1514 = vmatpush1.bf16.msra.mxu0 %v1501
          %1515 = vmatprep.subr.bf16.mxu0 0
          %1516 = vmatpush1.bf16.msra.mxu0 %v1502
          %1517 = vmatprep.subr.bf16.mxu0 0
          %1518 = vmatpush1.bf16.msra.mxu0 %v1503
          %1519 = vmatprep.subr.bf16.mxu0 0
          %1520 = vmatpush1.bf16.msra.mxu0 %v1504
          %1521 = vmatprep.subr.bf16.mxu0 0
          %1522 = vmatpush1.bf16.msra.mxu0 0
          %1523 = vmatprep.subr.bf16.mxu0 0
          %1524 = vmatpush1.bf16.msra.mxu0 0
          %1525 = vmatprep.subr.bf16.mxu0 0
          %1526 = vmatpush1.bf16.msra.mxu0 0
          %1527 = vmatprep.subr.bf16.mxu0 0
          %1528 = vmatpush1.bf16.msra.mxu0 0
          %1529 = vmatprep.subr.bf16.mxu0 0
          %1530 = vmatpush1.bf16.msra.mxu0 0
          %1531 = vmatprep.subr.bf16.mxu0 0
          %1532 = vmatpush1.bf16.msra.mxu0 0
          %1533 = vmatprep.subr.bf16.mxu0 0
          %1534 = vmatpush1.bf16.msra.mxu0 0
          %1535 = vmatprep.subr.bf16.mxu0 0
          %1536 = vmatpush1.bf16.msra.mxu0 0
          %1537 = vmatprep.subr.bf16.mxu0 0
          %1538 = vmatpush1.bf16.msra.mxu0 0
          %1539 = vmatprep.subr.bf16.mxu0 0
          %1540 = vmatpush1.bf16.msra.mxu0 0
          %1541 = vmatprep.subr.bf16.mxu0 0
          %1542 = vmatpush1.bf16.msra.mxu0 0
          %1543 = vmatprep.subr.bf16.mxu0 0
          %1544 = vmatpush1.bf16.msra.mxu0 0
          %1545 = vmatprep.mubr.bf16.mxu0 0
          %1546 = vmatmul.mubr.bf16.gmra.mrb[0].mxu0 %v1511
          %v1547 = vpop.f32.mrb[0].mxu0
          %v1548 = vadd.f32 %v1483, %v1547
          %v1549 = vpop.f32.mrb[0].mxu0
          %v1550 = vpop.f32.mrb[0].mxu0
          %v1551 = vpop.f32.mrb[0].mxu0
          %1552 = vdwg.mxu0
          %v1553 = vld [vmem:[%s9] sm:$0xf]
          %v1554 = vld [vmem:[%s9 + $0x4] sm:$0xf]
          %v1555 = vld [vmem:[%s9 + $0x8] sm:$0xf]
          %v1556 = vld [vmem:[%s9 + $0xc] sm:$0xf]
          %v1557 = vld [vmem:[%s10] sm:$0x1]
          %v1559 = vlaneseq
          %v1560 = vshrl.u32 %v1559, 7
          %v1561 = vsub.s32 0, %v1560
          %v1562 = vrot.slane %v1557, %v1561
          %v1568 = vunpack.c.l.b16 %v1553
          %v1569 = vunpack.c.l.b16 %v1554
          %v1570 = vunpack.c.l.b16 %v1555
          %v1571 = vunpack.c.l.b16 %v1556
          %v1572 = vpack.c.b16 %v1569, %v1568
          %v1573 = vpack.c.b16 %v1571, %v1570
          %1576 = vmatprep.subr.bf16.mxu0 0
          %1577 = vmatpush1.bf16.msra.mxu0 %v1572
          %1578 = vmatprep.subr.bf16.mxu0 0
          %1579 = vmatpush1.bf16.msra.mxu0 %v1573
          %1580 = vmatprep.subr.bf16.mxu0 0
          %1581 = vmatpush1.bf16.msra.mxu0 0
          %1582 = vmatprep.subr.bf16.mxu0 0
          %1583 = vmatpush1.bf16.msra.mxu0 0
          %1584 = vmatprep.subr.bf16.mxu0 0
          %1585 = vmatpush1.bf16.msra.mxu0 0
          %1586 = vmatprep.subr.bf16.mxu0 0
          %1587 = vmatpush1.bf16.msra.mxu0 0
          %1588 = vmatprep.subr.bf16.mxu0 0
          %1589 = vmatpush1.bf16.msra.mxu0 0
          %1590 = vmatprep.subr.bf16.mxu0 0
          %1591 = vmatpush1.bf16.msra.mxu0 0
          %1592 = vmatprep.subr.bf16.mxu0 0
          %1593 = vmatpush1.bf16.msra.mxu0 0
          %1594 = vmatprep.subr.bf16.mxu0 0
          %1595 = vmatpush1.bf16.msra.mxu0 0
          %1596 = vmatprep.subr.bf16.mxu0 0
          %1597 = vmatpush1.bf16.msra.mxu0 0
          %1598 = vmatprep.subr.bf16.mxu0 0
          %1599 = vmatpush1.bf16.msra.mxu0 0
          %1600 = vmatprep.subr.bf16.mxu0 0
          %1601 = vmatpush1.bf16.msra.mxu0 0
          %1602 = vmatprep.subr.bf16.mxu0 0
          %1603 = vmatpush1.bf16.msra.mxu0 0
          %1604 = vmatprep.subr.bf16.mxu0 0
          %1605 = vmatpush1.bf16.msra.mxu0 0
          %1606 = vmatprep.subr.bf16.mxu0 0
          %1607 = vmatpush1.bf16.msra.mxu0 0
          %1608 = vmatprep.mubr.bf16.mxu0 0
          %1609 = vmatmul.mubr.bf16.gmra.mrb[0].mxu0 %v623
          %v1610 = vpop.f32.mrb[0].mxu0
          %v1611 = vadd.f32 %v1562, %v1610
          %v1612 = vpop.f32.mrb[0].mxu0
          %v1613 = vpop.f32.mrb[0].mxu0
          %v1614 = vpop.f32.mrb[0].mxu0
          %1615 = vdwg.mxu0
          %v1616 = vadd.f32 %v1548, %v1611
          %v1617 = vxor.u32 %v1616, 2147483648
          %v1618 = vmul.f32 %v1617, 1.442695
          %v1619 = vpow.pop %v1618
          %v1620 = vadd.f32 %v1619, 1.0
          %v1621 = vrcp.pop %v1620
          %v1622 = vmul.f32 1.0, %v1621
          %1624 = vrot.lane.b32.xlu0 %v1611, 64
          %v1625 = vpop.permute.xlu0 %1624
          %v1627 = vmul.f32 %v1622, %v1625
          %1629 = vrot.lane.b32.xlu0 %v1627, 64
          %v1630 = vpop.permute.xlu0 %1629
          %v1632 = vadd.f32 %v1548, %v1630
          %v1633 = vtanh.pop %v1632
          %v1634 = vsub.f32 1.0, %v1622
          %1636 = vrot.lane.b32.xlu0 %v1633, 96
          %v1637 = vpop.permute.xlu0 %1636
          %v1639 = vmul.f32 %v1634, %v1637
          %1641 = vrot.lane.b32.xlu0 %v595, 32
          %v1642 = vpop.permute.xlu0 %1641
          %v1644 = vmul.f32 %v1622, %v1642
          %v1645 = vadd.f32 %v1639, %v1644
          %1648 = vrot.lane.b32.xlu0 %v594, 64
          %v1649 = vpop.permute.xlu0 %1648
          %v1651 = vsel %vm621, %v1464, %v1645
          %v1652 = vsel %vm1509, %v1651, %v1649
          %v1653 = vpack.c.bf16 %v1652, %v1652
          %vm1654 = vcmask 781312
          %1655 = vst.msk [vmem:[#allocation2] sm:$0xf] %vm1654, %v1653
          %1657 = vrot.lane.b32.xlu0 %v1645, 96
          %v1658 = vpop.permute.xlu0 %1657
          %1660 = vst.msk [vmem:[#allocation15] sm:$0xff] %vm621, %v1658
          %1661 = vst.msk [vmem:[#allocation17] sm:$0xff] %vm996, %v1007
        $region100: #{tpu_custom_call.1} parent=71 // pred_fallthru
          _
        %v1662 = vld [vmem:[#allocation2] sm:$0xf]
        %v1663 = vld [vmem:[%s536] sm:$0xf]
        %v1664 = vld [vmem:[%s536 + $0x4] sm:$0xf]
        %v1665 = vld [vmem:[%s536 + $0x8] sm:$0xf]
        %v1666 = vld [vmem:[%s536 + $0xc] sm:$0xf]
        %v1667 = vld [vmem:[%s536 + $0x10] sm:$0xf]
        %v1668 = vld [vmem:[%s536 + $0x14] sm:$0xf]
        %v1669 = vld [vmem:[%s536 + $0x18] sm:$0xf]
        %v1670 = vld [vmem:[%s536 + $0x1c] sm:$0xf]
        %v1671 = vld [vmem:[%s536 + $0x20] sm:$0xf]
        %v1672 = vld [vmem:[%s536 + $0x24] sm:$0xf]
        %v1673 = vld [vmem:[%s536 + $0x28] sm:$0xf]
        %v1674 = vld [vmem:[%s536 + $0x2c] sm:$0xf]
        %v1675 = vld [vmem:[%s588] sm:$0x1]
        %v1677 = vlaneseq
        %v1678 = vshrl.u32 %v1677, 7
        %v1679 = vsub.s32 0, %v1678
        %v1680 = vrot.slane %v1675, %v1679
        %v1694 = vunpack.c.l.b16 %v1663
        %v1695 = vunpack.c.l.b16 %v1664
        %v1696 = vunpack.c.l.b16 %v1665
        %v1697 = vunpack.c.l.b16 %v1666
        %v1698 = vunpack.c.l.b16 %v1667
        %v1699 = vunpack.c.l.b16 %v1668
        %v1700 = vunpack.c.l.b16 %v1669
        %v1701 = vunpack.c.l.b16 %v1670
        %v1702 = vunpack.c.l.b16 %v1671
        %v1703 = vunpack.c.l.b16 %v1672
        %v1704 = vunpack.c.l.b16 %v1673
        %v1705 = vunpack.c.l.b16 %v1674
        %v1706 = vpack.c.b16 %v1695, %v1694
        %v1707 = vpack.c.b16 %v1697, %v1696
        %v1708 = vpack.c.b16 %v1699, %v1698
        %v1709 = vpack.c.b16 %v1701, %v1700
        %v1710 = vpack.c.b16 %v1703, %v1702
        %v1711 = vpack.c.b16 %v1705, %v1704
        %vm1718 = vcmask 785408
        %v1720 = vsel %vm1718, %v1662, 0
        %1722 = vmatprep.subr.bf16.mxu0 0
        %1723 = vmatpush1.bf16.msra.mxu0 %v1706
        %1724 = vmatprep.subr.bf16.mxu0 0
        %1725 = vmatpush1.bf16.msra.mxu0 %v1707
        %1726 = vmatprep.subr.bf16.mxu0 0
        %1727 = vmatpush1.bf16.msra.mxu0 %v1708
        %1728 = vmatprep.subr.bf16.mxu0 0
        %1729 = vmatpush1.bf16.msra.mxu0 %v1709
        %1730 = vmatprep.subr.bf16.mxu0 0
        %1731 = vmatpush1.bf16.msra.mxu0 %v1710
        %1732 = vmatprep.subr.bf16.mxu0 0
        %1733 = vmatpush1.bf16.msra.mxu0 %v1711
        %1734 = vmatprep.subr.bf16.mxu0 0
        %1735 = vmatpush1.bf16.msra.mxu0 0
        %1736 = vmatprep.subr.bf16.mxu0 0
        %1737 = vmatpush1.bf16.msra.mxu0 0
        %1738 = vmatprep.subr.bf16.mxu0 0
        %1739 = vmatpush1.bf16.msra.mxu0 0
        %1740 = vmatprep.subr.bf16.mxu0 0
        %1741 = vmatpush1.bf16.msra.mxu0 0
        %1742 = vmatprep.subr.bf16.mxu0 0
        %1743 = vmatpush1.bf16.msra.mxu0 0
        %1744 = vmatprep.subr.bf16.mxu0 0
        %1745 = vmatpush1.bf16.msra.mxu0 0
        %1746 = vmatprep.subr.bf16.mxu0 0
        %1747 = vmatpush1.bf16.msra.mxu0 0
        %1748 = vmatprep.subr.bf16.mxu0 0
        %1749 = vmatpush1.bf16.msra.mxu0 0
        %1750 = vmatprep.subr.bf16.mxu0 0
        %1751 = vmatpush1.bf16.msra.mxu0 0
        %1752 = vmatprep.subr.bf16.mxu0 0
        %1753 = vmatpush1.bf16.msra.mxu0 0
        %1754 = vmatprep.mubr.bf16.mxu0 0
        %1755 = vmatmul.mubr.bf16.gmra.mrb[0].mxu0 %v1720
        %v1756 = vpop.f32.mrb[0].mxu0
        %v1757 = vadd.f32 %v1680, %v1756
        %v1758 = vpop.f32.mrb[0].mxu0
        %v1759 = vpop.f32.mrb[0].mxu0
        %v1760 = vpop.f32.mrb[0].mxu0
        %1761 = vdwg.mxu0
        %1762 = vst [vmem:[%s581] sm:$0xff] %v1757
        %s1763 = sand.u32 %s328, 1
        %s1764 = scalar_lea.sflag [#allocation5], %s1763
        %s1765 = sand.u32 %s328, 1
        %s1766 = smul.addr %s1765, 8
        %s1767 = scalar_lea.vmem [#allocation14], %s1766
        // Predicated region
        $region101: #{tpu_custom_call.1} parent=71 // pred_check
          %p1768 = pneg %p338
        $region102: #{tpu_custom_call.1} parent=71 // pred_check_branch
          %1770 = sbr.rel (%p1768) target = $region104
        $region103: #{tpu_custom_call.1} parent=71 // pred_region
          %s1772 = ssub.s32 128, 128
          %1773 = vsyncadd %s1764, %s1772
          %s1774 = smul.addr %s37, 128
          %s1775 = scalar_lea.hbm %s13, %s1774
          %s1777 = sshll.u32 %s1767, 4
          %s1778 = int_to_ptr.vmem [resolvable:$true] %s1777
          %1780 = dma.vmem_to_hbm [thread:$0]  %s1778, 128, %s1775, %s1764
        $region104: #{tpu_custom_call.1} parent=71 // pred_fallthru
          _
        // Predicated region
        $region105: #{tpu_custom_call.1} parent=71 // pred_check
          %p1781 = pneg %p359
        $region106: #{tpu_custom_call.1} parent=71 // pred_check_branch
          %1783 = sbr.rel (%p1781) target = $region108
        $region107: #{tpu_custom_call.1} parent=71 // pred_region
          %s1785 = ssub.s32 128, 128
          %1786 = vsyncadd [#allocation16], %s1785
          %s1788 = sshll.u32 [#allocation15], 4
          %s1789 = int_to_ptr.vmem [resolvable:$true] %s1788
          %1791 = dma.vmem_to_hbm [thread:$0]  %s1789, 128, %s14, [#allocation16]
        $region108: #{tpu_custom_call.1} parent=71 // pred_fallthru
          _
        // Predicated region
        $region109: #{tpu_custom_call.1} parent=71 // pred_check
          %p1792 = pneg %p380
        $region110: #{tpu_custom_call.1} parent=71 // pred_check_branch
          %1794 = sbr.rel (%p1792) target = $region112
        $region111: #{tpu_custom_call.1} parent=71 // pred_region
          %s1796 = ssub.s32 128, 128
          %1797 = vsyncadd [#allocation16], %s1796
          %s1799 = sshll.u32 [#allocation17], 4
          %s1800 = int_to_ptr.vmem [resolvable:$true] %s1799
          %1802 = dma.vmem_to_hbm [thread:$0]  %s1800, 128, %s15, [#allocation16]
        $region112: #{tpu_custom_call.1} parent=71 // pred_fallthru
          _
        // Predicated region
        $region113: #{tpu_custom_call.1} parent=71 // pred_check
          %p1803 = pneg %p359
        $region114: #{tpu_custom_call.1} parent=71 // pred_check_branch
          %1805 = sbr.rel (%p1803) target = $region116
        $region115: #{tpu_custom_call.1} parent=71 // pred_region
          %1806 = dma.done [#allocation16], 128
        $region116: #{tpu_custom_call.1} parent=71 // pred_fallthru
          _
        // Predicated region
        $region117: #{tpu_custom_call.1} parent=71 // pred_check
          %p1807 = pneg %p380
        $region118: #{tpu_custom_call.1} parent=71 // pred_check_branch
          %1809 = sbr.rel (%p1807) target = $region120
        $region119: #{tpu_custom_call.1} parent=71 // pred_region
          %1810 = dma.done [#allocation16], 128
        $region120: #{tpu_custom_call.1} parent=71 // pred_fallthru
          _
      $region72: #{tpu_custom_call.1} parent=5 // pred_fallthru
        _
      %p1811 = scmp.le.s32.totalorder 2, %s32
      // Predicated region
      $region121: #{tpu_custom_call.1} parent=5 // pred_check
        %p1812 = pneg %p1811
      $region122: #{tpu_custom_call.1} parent=5 // pred_check_branch
        %1814 = sbr.rel (%p1812) target = $region124
      $region123: #{tpu_custom_call.1} parent=5 // pred_region
        %s1815 = ssub.s32 %s32, 2
        // Predicated region
        $region125: #{tpu_custom_call.1} parent=123 // pred_check
          %p1816 = pneg %p344
        $region126: #{tpu_custom_call.1} parent=123 // pred_check_branch
          %1818 = sbr.rel (%p1816) target = $region128
        $region127: #{tpu_custom_call.1} parent=123 // pred_region
          %s1819 = sand.u32 %s329, 1
          %s1820 = scalar_lea.sflag [#allocation5], %s1819
          %s1821 = sand.u32 %s329, 1
          %s1822 = smul.addr %s1821, 8
          %s1823 = scalar_lea.vmem [#allocation14], %s1822
          %1824 = dma.done %s1820, 128
        $region128: #{tpu_custom_call.1} parent=123 // pred_fallthru
          _
      $region124: #{tpu_custom_call.1} parent=5 // pred_fallthru
        _
    $region6: #{tpu_custom_call.1} parent=1 // loop_footer
      %s36 = sadd.s32 1, %s32
    $region7: #{tpu_custom_call.1} parent=1 // loop_footer_branch
      %31 = sbr.rel target = $region3
    $region8: #{tpu_custom_call.1} parent=1 // loop_exit
      _
    %1825 = vsyncpa [#allocation4], 1
    %s1826 = scalar_lea.sflag [#allocation4], 1
    %1827 = vsyncpa %s1826, 1
    %1828 = vsyncpa [#allocation7], 1
    %1829 = vsyncpa [#allocation10], 1
    %1830 = vsyncpa [#allocation13], 1
    %s1831 = scalar_lea.sflag [#allocation13], 1
    %1832 = vsyncpa %s1831, 1
    %1833 = vsyncpa [#allocation5], 1
    %s1834 = scalar_lea.sflag [#allocation5], 1
    %1835 = vsyncpa %s1834, 1
    %1836 = vsyncpa [#allocation16], 1

</llo_original>
